<compile_context>
chip_gen: v5e
topology: v5e:2x2
jax: 0.10.0
libtpu: 0.0.40
codegen_flags: <defaults>
</compile_context>

<pallas_src>
import jax
import jax.numpy as jnp
from jax.experimental import pallas as pl
from jax.experimental.pallas import tpu as pltpu


def _pad_width(W):
    # >= W+1 (largest tap offset magnitude), rounded to 128 for aligned stores.
    return ((W + 1 + 127) // 128) * 128


def make_conv_block_kernel(H, W, Bt):
    """Fused Conv3x3+ReLU -> Conv3x3+ReLU kernel for one batch tile.

    Layout: channels on sublanes, flattened (batch_tile, H*W) on lanes.
    Each conv stage = 9 accumulated dots  W_tap(Cout, C) @ tap(C, Bt*HW).
    """
    HW = H * W
    N = Bt * HW          # lanes of packed activation
    PAD = _pad_width(W)  # zero guard band on each side of the packed images

    def _mod(a, m):
        if (m & (m - 1)) == 0:        # power-of-two fast path (test case)
            return jnp.bitwise_and(a, m - 1)
        return jax.lax.rem(a, m)      # general case

    def kernel(x_ref, w1_ref, b1_ref, w2_ref, b2_ref, o_ref, xpad1, xpad2):
        # ---- per-position validity masks (computed once, shared by stages) --
        flat = jax.lax.broadcasted_iota(jnp.int32, (1, N), 1)
        pos = _mod(flat, HW)           # position within its own image
        col = _mod(pos, W)             # column within its own row
        row_ok = {0: pos >= W, 1: None, 2: pos < HW - W}   # dh = 0 / 1 / 2
        col_ok = {0: col >= 1, 1: None, 2: col < W - 1}    # dw = 0 / 1 / 2

        def zero_pad_strips(xpad_ref):
            # Zero ONLY the two PAD-wide end strips; the middle N lanes are
            # fully overwritten by the activation store that follows.
            c = xpad_ref.shape[0]
            z = jnp.zeros((c, PAD), dtype=xpad_ref.dtype)
            xpad_ref[:, pl.ds(0, PAD)] = z
            xpad_ref[:, pl.ds(PAD + N, PAD)] = z

        def conv3x3_relu(xpad_ref, w_ref, b_ref):
            # Nine tap-accumulated dots; no patch buffer is materialized.
            acc = None
            for dh in range(3):
                for dw in range(3):
                    t = dh * 3 + dw
                    shift = (dh - 1) * W + (dw - 1)
                    tap = xpad_ref[:, pl.ds(PAD + shift, N)]   # (C, N)
                    m = row_ok[dh]
                    if col_ok[dw] is not None:
                        m = col_ok[dw] if m is None else jnp.logical_and(m, col_ok[dw])
                    if m is not None:
                        tap = jnp.where(m, tap, 0.0)
                    d = jnp.dot(w_ref[t], tap,
                                preferred_element_type=jnp.float32)
                    acc = d if acc is None else acc + d
            return jnp.maximum(acc + b_ref[...], 0.0)          # (Cout, N)

        # ---- stage 1: conv(Cin -> Cout) + ReLU ------------------------------
        zero_pad_strips(xpad1)
        for b in range(Bt):            # pack batch tile onto the lane axis
            xpad1[:, pl.ds(PAD + b * HW, HW)] = x_ref[b]
        y1 = conv3x3_relu(xpad1, w1_ref, b1_ref)                # (Cout, N)

        # ---- stage 2: conv(Cout -> Cout) + ReLU (intermediate stays in VMEM)
        zero_pad_strips(xpad2)
        xpad2[:, pl.ds(PAD, N)] = y1
        y2 = conv3x3_relu(xpad2, w2_ref, b2_ref)                # (Cout, N)

        # ---- unpack batch tile back into (Bt, Cout, HW) ---------------------
        for b in range(Bt):
            o_ref[b] = y2[:, b * HW:(b + 1) * HW].astype(o_ref.dtype)

    return kernel


def conv_block_forward(x_nchw, w1_oihw, b1, w2_oihw, b2, *, batch_tile=None):
    """Pallas equivalent of conv_block.forward (NCHW in, NCHW out)."""
    B, Cin, H, W = x_nchw.shape
    Cout = w1_oihw.shape[0]
    HW = H * W
    PAD = _pad_width(W)

    if batch_tile is None:
        batch_tile = B                 # one fat grid step (single-TC v5e/v6e);
                                       # on v7x pick B//2 etc. for >=2 parallel steps
    assert B % batch_tile == 0, "batch_tile must divide batch"
    nb = B // batch_tile

    # Metadata-only reshape: NCHW -> (B, C, H*W). No activation transposes.
    x_flat = x_nchw.reshape(B, Cin, HW)
    # Weights: OIHW -> (9, Cout, Cin) with tap index t = kh*3 + kw.
    w1_t = jnp.transpose(w1_oihw, (2, 3, 0, 1)).reshape(9, Cout, Cin)
    w2_t = jnp.transpose(w2_oihw, (2, 3, 0, 1)).reshape(9, Cout, Cout)
    b1_col = b1.reshape(Cout, 1)
    b2_col = b2.reshape(Cout, 1)

    out_flat = pl.pallas_call(
        make_conv_block_kernel(H, W, batch_tile),
        out_shape=jax.ShapeDtypeStruct((B, Cout, HW), jnp.float32),
        grid=(nb,),
        in_specs=[
            pl.BlockSpec((batch_tile, Cin, HW), lambda i: (i, 0, 0)),
            pl.BlockSpec((9, Cout, Cin), lambda i: (0, 0, 0)),
            pl.BlockSpec((Cout, 1), lambda i: (0, 0)),
            pl.BlockSpec((9, Cout, Cout), lambda i: (0, 0, 0)),
            pl.BlockSpec((Cout, 1), lambda i: (0, 0)),
        ],
        out_specs=pl.BlockSpec((batch_tile, Cout, HW), lambda i: (i, 0, 0)),
        scratch_shapes=[
            pltpu.VMEM((Cin, batch_tile * HW + 2 * PAD), jnp.float32),   # padded conv1 input
            pltpu.VMEM((Cout, batch_tile * HW + 2 * PAD), jnp.float32),  # padded conv2 input
        ],
        compiler_params=pltpu.CompilerParams(
            dimension_semantics=("parallel",)),
    )(x_flat, w1_t, b1_col, w2_t, b2_col)

    return out_flat.reshape(B, Cout, H, W)


def _reference(x_nchw, w1, b1, w2, b2):
    dn = ("NCHW", "OIHW", "NCHW")
    y = jax.lax.conv_general_dilated(x_nchw, w1, (1, 1), ((1, 1), (1, 1)),
                                     dimension_numbers=dn)
    y = jnp.maximum(y + b1[None, :, None, None], 0.0)
    y = jax.lax.conv_general_dilated(y, w2, (1, 1), ((1, 1), (1, 1)),
                                     dimension_numbers=dn)
    y = jnp.maximum(y + b2[None, :, None, None], 0.0)
    return y


if __name__ == "__main__":
    key = jax.random.PRNGKey(0)
    k1, k2, k3, k4, k5 = jax.random.split(key, 5)

    B, Cin, H, W = 2, 4, 16, 16
    Cout = 8

    x = jax.random.normal(k1, (B, Cin, H, W), dtype=jnp.float32)
    # Deterministic synthetic parameters (shapes from nn.Conv2d in __init__).
    w1 = jax.random.normal(k2, (Cout, Cin, 3, 3), dtype=jnp.float32) * 0.1
    b1 = jax.random.normal(k3, (Cout,), dtype=jnp.float32) * 0.1
    w2 = jax.random.normal(k4, (Cout, Cout, 3, 3), dtype=jnp.float32) * 0.1
    b2 = jax.random.normal(k5, (Cout,), dtype=jnp.float32) * 0.1

    out = conv_block_forward(x, w1, b1, w2, b2)
    out = jax.block_until_ready(out)

    ref = _reference(x, w1, b1, w2, b2)
    assert out.shape == ref.shape == (B, Cout, H, W)
    assert jnp.allclose(out, ref, atol=1e-4, rtol=1e-4)

    print("KERNEL_OK")
</pallas_src>

<mosaic_0001>
module attributes {stable_mosaic.version = 11 : i64} {
  func.func @kernel(%arg0: i32, %arg1: memref<2x4x256xf32, #tpu.memory_space<vmem>>, %arg2: memref<9x8x4xf32, #tpu.memory_space<vmem>>, %arg3: memref<8x1xf32, #tpu.memory_space<vmem>>, %arg4: memref<9x8x8xf32, #tpu.memory_space<vmem>>, %arg5: memref<8x1xf32, #tpu.memory_space<vmem>>, %arg6: memref<2x8x256xf32, #tpu.memory_space<vmem>>, %arg7: memref<4x768xf32, #tpu.memory_space<vmem>>, %arg8: memref<8x768xf32, #tpu.memory_space<vmem>>) attributes {dimension_semantics = [#tpu.dimension_semantics<parallel>], iteration_bounds = array<i64: 1>, scalar_prefetch = 0 : i64, scratch_operands = 2 : i64, tpu.core_type = #tpu.core_type<tc>, window_params = [{transform_indices = @transform_0, window_bounds = array<i64: 2, 4, 256>}, {pipeline_mode = #tpu.pipeline_mode<synchronous>, transform_indices = @transform_1, window_bounds = array<i64: 9, 8, 4>}, {pipeline_mode = #tpu.pipeline_mode<synchronous>, transform_indices = @transform_2, window_bounds = array<i64: 8, 1>}, {pipeline_mode = #tpu.pipeline_mode<synchronous>, transform_indices = @transform_3, window_bounds = array<i64: 9, 8, 8>}, {pipeline_mode = #tpu.pipeline_mode<synchronous>, transform_indices = @transform_4, window_bounds = array<i64: 8, 1>}, {transform_indices = @transform_5, window_bounds = array<i64: 2, 8, 256>}]} {
    %0 = tpu.iota {dimensions = array<i32: 1>} : vector<1x512xi32>
    %c255_i32 = arith.constant 255 : i32
    %1 = vector.broadcast %c255_i32 : i32 to vector<1x512xi32>
    %2 = arith.andi %0, %1 : vector<1x512xi32>
    %c15_i32 = arith.constant 15 : i32
    %3 = vector.broadcast %c15_i32 : i32 to vector<1x512xi32>
    %4 = arith.andi %2, %3 : vector<1x512xi32>
    %c16_i32 = arith.constant 16 : i32
    %5 = vector.broadcast %c16_i32 : i32 to vector<1x512xi32>
    %6 = arith.cmpi sge, %2, %5 : vector<1x512xi32>
    %c240_i32 = arith.constant 240 : i32
    %7 = vector.broadcast %c240_i32 : i32 to vector<1x512xi32>
    %8 = arith.cmpi slt, %2, %7 : vector<1x512xi32>
    %c1_i32 = arith.constant 1 : i32
    %9 = vector.broadcast %c1_i32 : i32 to vector<1x512xi32>
    %10 = arith.cmpi sge, %4, %9 : vector<1x512xi32>
    %c15_i32_0 = arith.constant 15 : i32
    %11 = vector.broadcast %c15_i32_0 : i32 to vector<1x512xi32>
    %12 = arith.cmpi slt, %4, %11 : vector<1x512xi32>
    %cst = arith.constant 0.000000e+00 : f32
    %13 = vector.broadcast %cst : f32 to vector<4x128xf32>
    %c0 = arith.constant 0 : index
    %c0_1 = arith.constant 0 : index
    %14 = vector.load %arg7[%c0, %c0_1] : memref<4x768xf32, #tpu.memory_space<vmem>>, vector<4x128xf32>
    tpu.vector_store %arg7[%c0, %c0_1], %13 {strides = array<i32>} : memref<4x768xf32, #tpu.memory_space<vmem>>, vector<4x128xf32>,
    %c0_2 = arith.constant 0 : index
    %c640 = arith.constant 640 : index
    %15 = vector.load %arg7[%c0_2, %c640] : memref<4x768xf32, #tpu.memory_space<vmem>>, vector<4x128xf32>
    tpu.vector_store %arg7[%c0_2, %c640], %13 {strides = array<i32>} : memref<4x768xf32, #tpu.memory_space<vmem>>, vector<4x128xf32>,
    %c0_3 = arith.constant 0 : index
    %c0_4 = arith.constant 0 : index
    %c0_5 = arith.constant 0 : index
    %16 = vector.load %arg1[%c0_3, %c0_4, %c0_5] : memref<2x4x256xf32, #tpu.memory_space<vmem>>, vector<1x4x256xf32>
    %17 = vector.shape_cast %16 : vector<1x4x256xf32> to vector<4x256xf32>
    %c0_6 = arith.constant 0 : index
    %c128 = arith.constant 128 : index
    %18 = vector.load %arg7[%c0_6, %c128] : memref<4x768xf32, #tpu.memory_space<vmem>>, vector<4x256xf32>
    tpu.vector_store %arg7[%c0_6, %c128], %17 {strides = array<i32>} : memref<4x768xf32, #tpu.memory_space<vmem>>, vector<4x256xf32>,
    %c1 = arith.constant 1 : index
    %c0_7 = arith.constant 0 : index
    %c0_8 = arith.constant 0 : index
    %19 = vector.load %arg1[%c1, %c0_7, %c0_8] : memref<2x4x256xf32, #tpu.memory_space<vmem>>, vector<1x4x256xf32>
    %20 = vector.shape_cast %19 : vector<1x4x256xf32> to vector<4x256xf32>
    %c0_9 = arith.constant 0 : index
    %c384 = arith.constant 384 : index
    %21 = vector.load %arg7[%c0_9, %c384] : memref<4x768xf32, #tpu.memory_space<vmem>>, vector<4x256xf32>
    tpu.vector_store %arg7[%c0_9, %c384], %20 {strides = array<i32>} : memref<4x768xf32, #tpu.memory_space<vmem>>, vector<4x256xf32>,
    %c0_10 = arith.constant 0 : index
    %c111 = arith.constant 111 : index
    %22 = vector.load %arg7[%c0_10, %c111] : memref<4x768xf32, #tpu.memory_space<vmem>>, vector<4x512xf32>
    %23 = arith.andi %6, %10 : vector<1x512xi1>
    %cst_11 = arith.constant 0.000000e+00 : f32
    %24 = vector.shape_cast %23 : vector<1x512xi1> to vector<1x512xi1>
    %25 = vector.broadcast %24 : vector<1x512xi1> to vector<4x512xi1>
    %26 = vector.broadcast %cst_11 : f32 to vector<4x512xf32>
    %27 = arith.select %25, %22, %26 : vector<4x512xi1>, vector<4x512xf32>
    %c0_12 = arith.constant 0 : index
    %c0_13 = arith.constant 0 : index
    %c0_14 = arith.constant 0 : index
    %28 = vector.load %arg2[%c0_12, %c0_13, %c0_14] : memref<9x8x4xf32, #tpu.memory_space<vmem>>, vector<1x8x4xf32>
    %29 = vector.shape_cast %28 : vector<1x8x4xf32> to vector<8x4xf32>
    %cst_15 = arith.constant dense<0.000000e+00> : vector<8x512xf32>
    %30 = tpu.matmul %29, %27, %cst_15 {dimension_numbers = #tpu.dot_dimension_numbers<[1], [0], [0], [1], [0, 0, 1, 1], [], []>} : vector<8x4xf32>, vector<4x512xf32>, vector<8x512xf32> -> vector<8x512xf32>
    %c0_16 = arith.constant 0 : index
    %c112 = arith.constant 112 : index
    %31 = vector.load %arg7[%c0_16, %c112] : memref<4x768xf32, #tpu.memory_space<vmem>>, vector<4x512xf32>
    %cst_17 = arith.constant 0.000000e+00 : f32
    %32 = vector.shape_cast %6 : vector<1x512xi1> to vector<1x512xi1>
    %33 = vector.broadcast %32 : vector<1x512xi1> to vector<4x512xi1>
    %34 = vector.broadcast %cst_17 : f32 to vector<4x512xf32>
    %35 = arith.select %33, %31, %34 : vector<4x512xi1>, vector<4x512xf32>
    %c1_18 = arith.constant 1 : index
    %c0_19 = arith.constant 0 : index
    %c0_20 = arith.constant 0 : index
    %36 = vector.load %arg2[%c1_18, %c0_19, %c0_20] : memref<9x8x4xf32, #tpu.memory_space<vmem>>, vector<1x8x4xf32>
    %37 = vector.shape_cast %36 : vector<1x8x4xf32> to vector<8x4xf32>
    %cst_21 = arith.constant dense<0.000000e+00> : vector<8x512xf32>
    %38 = tpu.matmul %37, %35, %cst_21 {dimension_numbers = #tpu.dot_dimension_numbers<[1], [0], [0], [1], [0, 0, 1, 1], [], []>} : vector<8x4xf32>, vector<4x512xf32>, vector<8x512xf32> -> vector<8x512xf32>
    %39 = arith.addf %30, %38 : vector<8x512xf32>
    %c0_22 = arith.constant 0 : index
    %c113 = arith.constant 113 : index
    %40 = vector.load %arg7[%c0_22, %c113] : memref<4x768xf32, #tpu.memory_space<vmem>>, vector<4x512xf32>
    %41 = arith.andi %6, %12 : vector<1x512xi1>
    %cst_23 = arith.constant 0.000000e+00 : f32
    %42 = vector.shape_cast %41 : vector<1x512xi1> to vector<1x512xi1>
    %43 = vector.broadcast %42 : vector<1x512xi1> to vector<4x512xi1>
    %44 = vector.broadcast %cst_23 : f32 to vector<4x512xf32>
    %45 = arith.select %43, %40, %44 : vector<4x512xi1>, vector<4x512xf32>
    %c2 = arith.constant 2 : index
    %c0_24 = arith.constant 0 : index
    %c0_25 = arith.constant 0 : index
    %46 = vector.load %arg2[%c2, %c0_24, %c0_25] : memref<9x8x4xf32, #tpu.memory_space<vmem>>, vector<1x8x4xf32>
    %47 = vector.shape_cast %46 : vector<1x8x4xf32> to vector<8x4xf32>
    %cst_26 = arith.constant dense<0.000000e+00> : vector<8x512xf32>
    %48 = tpu.matmul %47, %45, %cst_26 {dimension_numbers = #tpu.dot_dimension_numbers<[1], [0], [0], [1], [0, 0, 1, 1], [], []>} : vector<8x4xf32>, vector<4x512xf32>, vector<8x512xf32> -> vector<8x512xf32>
    %49 = arith.addf %39, %48 : vector<8x512xf32>
    %c0_27 = arith.constant 0 : index
    %c127 = arith.constant 127 : index
    %50 = vector.load %arg7[%c0_27, %c127] : memref<4x768xf32, #tpu.memory_space<vmem>>, vector<4x512xf32>
    %cst_28 = arith.constant 0.000000e+00 : f32
    %51 = vector.shape_cast %10 : vector<1x512xi1> to vector<1x512xi1>
    %52 = vector.broadcast %51 : vector<1x512xi1> to vector<4x512xi1>
    %53 = vector.broadcast %cst_28 : f32 to vector<4x512xf32>
    %54 = arith.select %52, %50, %53 : vector<4x512xi1>, vector<4x512xf32>
    %c3 = arith.constant 3 : index
    %c0_29 = arith.constant 0 : index
    %c0_30 = arith.constant 0 : index
    %55 = vector.load %arg2[%c3, %c0_29, %c0_30] : memref<9x8x4xf32, #tpu.memory_space<vmem>>, vector<1x8x4xf32>
    %56 = vector.shape_cast %55 : vector<1x8x4xf32> to vector<8x4xf32>
    %cst_31 = arith.constant dense<0.000000e+00> : vector<8x512xf32>
    %57 = tpu.matmul %56, %54, %cst_31 {dimension_numbers = #tpu.dot_dimension_numbers<[1], [0], [0], [1], [0, 0, 1, 1], [], []>} : vector<8x4xf32>, vector<4x512xf32>, vector<8x512xf32> -> vector<8x512xf32>
    %58 = arith.addf %49, %57 : vector<8x512xf32>
    %c0_32 = arith.constant 0 : index
    %c128_33 = arith.constant 128 : index
    %59 = vector.load %arg7[%c0_32, %c128_33] : memref<4x768xf32, #tpu.memory_space<vmem>>, vector<4x512xf32>
    %c4 = arith.constant 4 : index
    %c0_34 = arith.constant 0 : index
    %c0_35 = arith.constant 0 : index
    %60 = vector.load %arg2[%c4, %c0_34, %c0_35] : memref<9x8x4xf32, #tpu.memory_space<vmem>>, vector<1x8x4xf32>
    %61 = vector.shape_cast %60 : vector<1x8x4xf32> to vector<8x4xf32>
    %cst_36 = arith.constant dense<0.000000e+00> : vector<8x512xf32>
    %62 = tpu.matmul %61, %59, %cst_36 {dimension_numbers = #tpu.dot_dimension_numbers<[1], [0], [0], [1], [0, 0, 1, 1], [], []>} : vector<8x4xf32>, vector<4x512xf32>, vector<8x512xf32> -> vector<8x512xf32>
    %63 = arith.addf %58, %62 : vector<8x512xf32>
    %c0_37 = arith.constant 0 : index
    %c129 = arith.constant 129 : index
    %64 = vector.load %arg7[%c0_37, %c129] : memref<4x768xf32, #tpu.memory_space<vmem>>, vector<4x512xf32>
    %cst_38 = arith.constant 0.000000e+00 : f32
    %65 = vector.shape_cast %12 : vector<1x512xi1> to vector<1x512xi1>
    %66 = vector.broadcast %65 : vector<1x512xi1> to vector<4x512xi1>
    %67 = vector.broadcast %cst_38 : f32 to vector<4x512xf32>
    %68 = arith.select %66, %64, %67 : vector<4x512xi1>, vector<4x512xf32>
    %c5 = arith.constant 5 : index
    %c0_39 = arith.constant 0 : index
    %c0_40 = arith.constant 0 : index
    %69 = vector.load %arg2[%c5, %c0_39, %c0_40] : memref<9x8x4xf32, #tpu.memory_space<vmem>>, vector<1x8x4xf32>
    %70 = vector.shape_cast %69 : vector<1x8x4xf32> to vector<8x4xf32>
    %cst_41 = arith.constant dense<0.000000e+00> : vector<8x512xf32>
    %71 = tpu.matmul %70, %68, %cst_41 {dimension_numbers = #tpu.dot_dimension_numbers<[1], [0], [0], [1], [0, 0, 1, 1], [], []>} : vector<8x4xf32>, vector<4x512xf32>, vector<8x512xf32> -> vector<8x512xf32>
    %72 = arith.addf %63, %71 : vector<8x512xf32>
    %c0_42 = arith.constant 0 : index
    %c143 = arith.constant 143 : index
    %73 = vector.load %arg7[%c0_42, %c143] : memref<4x768xf32, #tpu.memory_space<vmem>>, vector<4x512xf32>
    %74 = arith.andi %8, %10 : vector<1x512xi1>
    %cst_43 = arith.constant 0.000000e+00 : f32
    %75 = vector.shape_cast %74 : vector<1x512xi1> to vector<1x512xi1>
    %76 = vector.broadcast %75 : vector<1x512xi1> to vector<4x512xi1>
    %77 = vector.broadcast %cst_43 : f32 to vector<4x512xf32>
    %78 = arith.select %76, %73, %77 : vector<4x512xi1>, vector<4x512xf32>
    %c6 = arith.constant 6 : index
    %c0_44 = arith.constant 0 : index
    %c0_45 = arith.constant 0 : index
    %79 = vector.load %arg2[%c6, %c0_44, %c0_45] : memref<9x8x4xf32, #tpu.memory_space<vmem>>, vector<1x8x4xf32>
    %80 = vector.shape_cast %79 : vector<1x8x4xf32> to vector<8x4xf32>
    %cst_46 = arith.constant dense<0.000000e+00> : vector<8x512xf32>
    %81 = tpu.matmul %80, %78, %cst_46 {dimension_numbers = #tpu.dot_dimension_numbers<[1], [0], [0], [1], [0, 0, 1, 1], [], []>} : vector<8x4xf32>, vector<4x512xf32>, vector<8x512xf32> -> vector<8x512xf32>
    %82 = arith.addf %72, %81 : vector<8x512xf32>
    %c0_47 = arith.constant 0 : index
    %c144 = arith.constant 144 : index
    %83 = vector.load %arg7[%c0_47, %c144] : memref<4x768xf32, #tpu.memory_space<vmem>>, vector<4x512xf32>
    %cst_48 = arith.constant 0.000000e+00 : f32
    %84 = vector.shape_cast %8 : vector<1x512xi1> to vector<1x512xi1>
    %85 = vector.broadcast %84 : vector<1x512xi1> to vector<4x512xi1>
    %86 = vector.broadcast %cst_48 : f32 to vector<4x512xf32>
    %87 = arith.select %85, %83, %86 : vector<4x512xi1>, vector<4x512xf32>
    %c7 = arith.constant 7 : index
    %c0_49 = arith.constant 0 : index
    %c0_50 = arith.constant 0 : index
    %88 = vector.load %arg2[%c7, %c0_49, %c0_50] : memref<9x8x4xf32, #tpu.memory_space<vmem>>, vector<1x8x4xf32>
    %89 = vector.shape_cast %88 : vector<1x8x4xf32> to vector<8x4xf32>
    %cst_51 = arith.constant dense<0.000000e+00> : vector<8x512xf32>
    %90 = tpu.matmul %89, %87, %cst_51 {dimension_numbers = #tpu.dot_dimension_numbers<[1], [0], [0], [1], [0, 0, 1, 1], [], []>} : vector<8x4xf32>, vector<4x512xf32>, vector<8x512xf32> -> vector<8x512xf32>
    %91 = arith.addf %82, %90 : vector<8x512xf32>
    %c0_52 = arith.constant 0 : index
    %c145 = arith.constant 145 : index
    %92 = vector.load %arg7[%c0_52, %c145] : memref<4x768xf32, #tpu.memory_space<vmem>>, vector<4x512xf32>
    %93 = arith.andi %8, %12 : vector<1x512xi1>
    %cst_53 = arith.constant 0.000000e+00 : f32
    %94 = vector.shape_cast %93 : vector<1x512xi1> to vector<1x512xi1>
    %95 = vector.broadcast %94 : vector<1x512xi1> to vector<4x512xi1>
    %96 = vector.broadcast %cst_53 : f32 to vector<4x512xf32>
    %97 = arith.select %95, %92, %96 : vector<4x512xi1>, vector<4x512xf32>
    %c8 = arith.constant 8 : index
    %c0_54 = arith.constant 0 : index
    %c0_55 = arith.constant 0 : index
    %98 = vector.load %arg2[%c8, %c0_54, %c0_55] : memref<9x8x4xf32, #tpu.memory_space<vmem>>, vector<1x8x4xf32>
    %99 = vector.shape_cast %98 : vector<1x8x4xf32> to vector<8x4xf32>
    %cst_56 = arith.constant dense<0.000000e+00> : vector<8x512xf32>
    %100 = tpu.matmul %99, %97, %cst_56 {dimension_numbers = #tpu.dot_dimension_numbers<[1], [0], [0], [1], [0, 0, 1, 1], [], []>} : vector<8x4xf32>, vector<4x512xf32>, vector<8x512xf32> -> vector<8x512xf32>
    %101 = arith.addf %91, %100 : vector<8x512xf32>
    %c0_57 = arith.constant 0 : index
    %c0_58 = arith.constant 0 : index
    %102 = vector.load %arg3[%c0_57, %c0_58] : memref<8x1xf32, #tpu.memory_space<vmem>>, vector<8x1xf32>
    %103 = vector.broadcast %102 : vector<8x1xf32> to vector<8x512xf32>
    %104 = arith.addf %101, %103 : vector<8x512xf32>
    %cst_59 = arith.constant 0.000000e+00 : f32
    %105 = vector.broadcast %cst_59 : f32 to vector<8x512xf32>
    %106 = arith.maximumf %104, %105 : vector<8x512xf32>
    %cst_60 = arith.constant 0.000000e+00 : f32
    %107 = vector.broadcast %cst_60 : f32 to vector<8x128xf32>
    %c0_61 = arith.constant 0 : index
    %c0_62 = arith.constant 0 : index
    %108 = vector.load %arg8[%c0_61, %c0_62] : memref<8x768xf32, #tpu.memory_space<vmem>>, vector<8x128xf32>
    tpu.vector_store %arg8[%c0_61, %c0_62], %107 {strides = array<i32>} : memref<8x768xf32, #tpu.memory_space<vmem>>, vector<8x128xf32>,
    %c0_63 = arith.constant 0 : index
    %c640_64 = arith.constant 640 : index
    %109 = vector.load %arg8[%c0_63, %c640_64] : memref<8x768xf32, #tpu.memory_space<vmem>>, vector<8x128xf32>
    tpu.vector_store %arg8[%c0_63, %c640_64], %107 {strides = array<i32>} : memref<8x768xf32, #tpu.memory_space<vmem>>, vector<8x128xf32>,
    %c0_65 = arith.constant 0 : index
    %c128_66 = arith.constant 128 : index
    %110 = vector.load %arg8[%c0_65, %c128_66] : memref<8x768xf32, #tpu.memory_space<vmem>>, vector<8x512xf32>
    tpu.vector_store %arg8[%c0_65, %c128_66], %106 {strides = array<i32>} : memref<8x768xf32, #tpu.memory_space<vmem>>, vector<8x512xf32>,
    %c0_67 = arith.constant 0 : index
    %c111_68 = arith.constant 111 : index
    %111 = vector.load %arg8[%c0_67, %c111_68] : memref<8x768xf32, #tpu.memory_space<vmem>>, vector<8x512xf32>
    %112 = arith.andi %6, %10 : vector<1x512xi1>
    %cst_69 = arith.constant 0.000000e+00 : f32
    %113 = vector.shape_cast %112 : vector<1x512xi1> to vector<1x512xi1>
    %114 = vector.broadcast %113 : vector<1x512xi1> to vector<8x512xi1>
    %115 = vector.broadcast %cst_69 : f32 to vector<8x512xf32>
    %116 = arith.select %114, %111, %115 : vector<8x512xi1>, vector<8x512xf32>
    %c0_70 = arith.constant 0 : index
    %c0_71 = arith.constant 0 : index
    %c0_72 = arith.constant 0 : index
    %117 = vector.load %arg4[%c0_70, %c0_71, %c0_72] : memref<9x8x8xf32, #tpu.memory_space<vmem>>, vector<1x8x8xf32>
    %118 = vector.shape_cast %117 : vector<1x8x8xf32> to vector<8x8xf32>
    %cst_73 = arith.constant dense<0.000000e+00> : vector<8x512xf32>
    %119 = tpu.matmul %118, %116, %cst_73 {dimension_numbers = #tpu.dot_dimension_numbers<[1], [0], [0], [1], [0, 0, 1, 1], [], []>} : vector<8x8xf32>, vector<8x512xf32>, vector<8x512xf32> -> vector<8x512xf32>
    %c0_74 = arith.constant 0 : index
    %c112_75 = arith.constant 112 : index
    %120 = vector.load %arg8[%c0_74, %c112_75] : memref<8x768xf32, #tpu.memory_space<vmem>>, vector<8x512xf32>
    %cst_76 = arith.constant 0.000000e+00 : f32
    %121 = vector.shape_cast %6 : vector<1x512xi1> to vector<1x512xi1>
    %122 = vector.broadcast %121 : vector<1x512xi1> to vector<8x512xi1>
    %123 = vector.broadcast %cst_76 : f32 to vector<8x512xf32>
    %124 = arith.select %122, %120, %123 : vector<8x512xi1>, vector<8x512xf32>
    %c1_77 = arith.constant 1 : index
    %c0_78 = arith.constant 0 : index
    %c0_79 = arith.constant 0 : index
    %125 = vector.load %arg4[%c1_77, %c0_78, %c0_79] : memref<9x8x8xf32, #tpu.memory_space<vmem>>, vector<1x8x8xf32>
    %126 = vector.shape_cast %125 : vector<1x8x8xf32> to vector<8x8xf32>
    %cst_80 = arith.constant dense<0.000000e+00> : vector<8x512xf32>
    %127 = tpu.matmul %126, %124, %cst_80 {dimension_numbers = #tpu.dot_dimension_numbers<[1], [0], [0], [1], [0, 0, 1, 1], [], []>} : vector<8x8xf32>, vector<8x512xf32>, vector<8x512xf32> -> vector<8x512xf32>
    %128 = arith.addf %119, %127 : vector<8x512xf32>
    %c0_81 = arith.constant 0 : index
    %c113_82 = arith.constant 113 : index
    %129 = vector.load %arg8[%c0_81, %c113_82] : memref<8x768xf32, #tpu.memory_space<vmem>>, vector<8x512xf32>
    %130 = arith.andi %6, %12 : vector<1x512xi1>
    %cst_83 = arith.constant 0.000000e+00 : f32
    %131 = vector.shape_cast %130 : vector<1x512xi1> to vector<1x512xi1>
    %132 = vector.broadcast %131 : vector<1x512xi1> to vector<8x512xi1>
    %133 = vector.broadcast %cst_83 : f32 to vector<8x512xf32>
    %134 = arith.select %132, %129, %133 : vector<8x512xi1>, vector<8x512xf32>
    %c2_84 = arith.constant 2 : index
    %c0_85 = arith.constant 0 : index
    %c0_86 = arith.constant 0 : index
    %135 = vector.load %arg4[%c2_84, %c0_85, %c0_86] : memref<9x8x8xf32, #tpu.memory_space<vmem>>, vector<1x8x8xf32>
    %136 = vector.shape_cast %135 : vector<1x8x8xf32> to vector<8x8xf32>
    %cst_87 = arith.constant dense<0.000000e+00> : vector<8x512xf32>
    %137 = tpu.matmul %136, %134, %cst_87 {dimension_numbers = #tpu.dot_dimension_numbers<[1], [0], [0], [1], [0, 0, 1, 1], [], []>} : vector<8x8xf32>, vector<8x512xf32>, vector<8x512xf32> -> vector<8x512xf32>
    %138 = arith.addf %128, %137 : vector<8x512xf32>
    %c0_88 = arith.constant 0 : index
    %c127_89 = arith.constant 127 : index
    %139 = vector.load %arg8[%c0_88, %c127_89] : memref<8x768xf32, #tpu.memory_space<vmem>>, vector<8x512xf32>
    %cst_90 = arith.constant 0.000000e+00 : f32
    %140 = vector.shape_cast %10 : vector<1x512xi1> to vector<1x512xi1>
    %141 = vector.broadcast %140 : vector<1x512xi1> to vector<8x512xi1>
    %142 = vector.broadcast %cst_90 : f32 to vector<8x512xf32>
    %143 = arith.select %141, %139, %142 : vector<8x512xi1>, vector<8x512xf32>
    %c3_91 = arith.constant 3 : index
    %c0_92 = arith.constant 0 : index
    %c0_93 = arith.constant 0 : index
    %144 = vector.load %arg4[%c3_91, %c0_92, %c0_93] : memref<9x8x8xf32, #tpu.memory_space<vmem>>, vector<1x8x8xf32>
    %145 = vector.shape_cast %144 : vector<1x8x8xf32> to vector<8x8xf32>
    %cst_94 = arith.constant dense<0.000000e+00> : vector<8x512xf32>
    %146 = tpu.matmul %145, %143, %cst_94 {dimension_numbers = #tpu.dot_dimension_numbers<[1], [0], [0], [1], [0, 0, 1, 1], [], []>} : vector<8x8xf32>, vector<8x512xf32>, vector<8x512xf32> -> vector<8x512xf32>
    %147 = arith.addf %138, %146 : vector<8x512xf32>
    %c0_95 = arith.constant 0 : index
    %c128_96 = arith.constant 128 : index
    %148 = vector.load %arg8[%c0_95, %c128_96] : memref<8x768xf32, #tpu.memory_space<vmem>>, vector<8x512xf32>
    %c4_97 = arith.constant 4 : index
    %c0_98 = arith.constant 0 : index
    %c0_99 = arith.constant 0 : index
    %149 = vector.load %arg4[%c4_97, %c0_98, %c0_99] : memref<9x8x8xf32, #tpu.memory_space<vmem>>, vector<1x8x8xf32>
    %150 = vector.shape_cast %149 : vector<1x8x8xf32> to vector<8x8xf32>
    %cst_100 = arith.constant dense<0.000000e+00> : vector<8x512xf32>
    %151 = tpu.matmul %150, %148, %cst_100 {dimension_numbers = #tpu.dot_dimension_numbers<[1], [0], [0], [1], [0, 0, 1, 1], [], []>} : vector<8x8xf32>, vector<8x512xf32>, vector<8x512xf32> -> vector<8x512xf32>
    %152 = arith.addf %147, %151 : vector<8x512xf32>
    %c0_101 = arith.constant 0 : index
    %c129_102 = arith.constant 129 : index
    %153 = vector.load %arg8[%c0_101, %c129_102] : memref<8x768xf32, #tpu.memory_space<vmem>>, vector<8x512xf32>
    %cst_103 = arith.constant 0.000000e+00 : f32
    %154 = vector.shape_cast %12 : vector<1x512xi1> to vector<1x512xi1>
    %155 = vector.broadcast %154 : vector<1x512xi1> to vector<8x512xi1>
    %156 = vector.broadcast %cst_103 : f32 to vector<8x512xf32>
    %157 = arith.select %155, %153, %156 : vector<8x512xi1>, vector<8x512xf32>
    %c5_104 = arith.constant 5 : index
    %c0_105 = arith.constant 0 : index
    %c0_106 = arith.constant 0 : index
    %158 = vector.load %arg4[%c5_104, %c0_105, %c0_106] : memref<9x8x8xf32, #tpu.memory_space<vmem>>, vector<1x8x8xf32>
    %159 = vector.shape_cast %158 : vector<1x8x8xf32> to vector<8x8xf32>
    %cst_107 = arith.constant dense<0.000000e+00> : vector<8x512xf32>
    %160 = tpu.matmul %159, %157, %cst_107 {dimension_numbers = #tpu.dot_dimension_numbers<[1], [0], [0], [1], [0, 0, 1, 1], [], []>} : vector<8x8xf32>, vector<8x512xf32>, vector<8x512xf32> -> vector<8x512xf32>
    %161 = arith.addf %152, %160 : vector<8x512xf32>
    %c0_108 = arith.constant 0 : index
    %c143_109 = arith.constant 143 : index
    %162 = vector.load %arg8[%c0_108, %c143_109] : memref<8x768xf32, #tpu.memory_space<vmem>>, vector<8x512xf32>
    %163 = arith.andi %8, %10 : vector<1x512xi1>
    %cst_110 = arith.constant 0.000000e+00 : f32
    %164 = vector.shape_cast %163 : vector<1x512xi1> to vector<1x512xi1>
    %165 = vector.broadcast %164 : vector<1x512xi1> to vector<8x512xi1>
    %166 = vector.broadcast %cst_110 : f32 to vector<8x512xf32>
    %167 = arith.select %165, %162, %166 : vector<8x512xi1>, vector<8x512xf32>
    %c6_111 = arith.constant 6 : index
    %c0_112 = arith.constant 0 : index
    %c0_113 = arith.constant 0 : index
    %168 = vector.load %arg4[%c6_111, %c0_112, %c0_113] : memref<9x8x8xf32, #tpu.memory_space<vmem>>, vector<1x8x8xf32>
    %169 = vector.shape_cast %168 : vector<1x8x8xf32> to vector<8x8xf32>
    %cst_114 = arith.constant dense<0.000000e+00> : vector<8x512xf32>
    %170 = tpu.matmul %169, %167, %cst_114 {dimension_numbers = #tpu.dot_dimension_numbers<[1], [0], [0], [1], [0, 0, 1, 1], [], []>} : vector<8x8xf32>, vector<8x512xf32>, vector<8x512xf32> -> vector<8x512xf32>
    %171 = arith.addf %161, %170 : vector<8x512xf32>
    %c0_115 = arith.constant 0 : index
    %c144_116 = arith.constant 144 : index
    %172 = vector.load %arg8[%c0_115, %c144_116] : memref<8x768xf32, #tpu.memory_space<vmem>>, vector<8x512xf32>
    %cst_117 = arith.constant 0.000000e+00 : f32
    %173 = vector.shape_cast %8 : vector<1x512xi1> to vector<1x512xi1>
    %174 = vector.broadcast %173 : vector<1x512xi1> to vector<8x512xi1>
    %175 = vector.broadcast %cst_117 : f32 to vector<8x512xf32>
    %176 = arith.select %174, %172, %175 : vector<8x512xi1>, vector<8x512xf32>
    %c7_118 = arith.constant 7 : index
    %c0_119 = arith.constant 0 : index
    %c0_120 = arith.constant 0 : index
    %177 = vector.load %arg4[%c7_118, %c0_119, %c0_120] : memref<9x8x8xf32, #tpu.memory_space<vmem>>, vector<1x8x8xf32>
    %178 = vector.shape_cast %177 : vector<1x8x8xf32> to vector<8x8xf32>
    %cst_121 = arith.constant dense<0.000000e+00> : vector<8x512xf32>
    %179 = tpu.matmul %178, %176, %cst_121 {dimension_numbers = #tpu.dot_dimension_numbers<[1], [0], [0], [1], [0, 0, 1, 1], [], []>} : vector<8x8xf32>, vector<8x512xf32>, vector<8x512xf32> -> vector<8x512xf32>
    %180 = arith.addf %171, %179 : vector<8x512xf32>
    %c0_122 = arith.constant 0 : index
    %c145_123 = arith.constant 145 : index
    %181 = vector.load %arg8[%c0_122, %c145_123] : memref<8x768xf32, #tpu.memory_space<vmem>>, vector<8x512xf32>
    %182 = arith.andi %8, %12 : vector<1x512xi1>
    %cst_124 = arith.constant 0.000000e+00 : f32
    %183 = vector.shape_cast %182 : vector<1x512xi1> to vector<1x512xi1>
    %184 = vector.broadcast %183 : vector<1x512xi1> to vector<8x512xi1>
    %185 = vector.broadcast %cst_124 : f32 to vector<8x512xf32>
    %186 = arith.select %184, %181, %185 : vector<8x512xi1>, vector<8x512xf32>
    %c8_125 = arith.constant 8 : index
    %c0_126 = arith.constant 0 : index
    %c0_127 = arith.constant 0 : index
    %187 = vector.load %arg4[%c8_125, %c0_126, %c0_127] : memref<9x8x8xf32, #tpu.memory_space<vmem>>, vector<1x8x8xf32>
    %188 = vector.shape_cast %187 : vector<1x8x8xf32> to vector<8x8xf32>
    %cst_128 = arith.constant dense<0.000000e+00> : vector<8x512xf32>
    %189 = tpu.matmul %188, %186, %cst_128 {dimension_numbers = #tpu.dot_dimension_numbers<[1], [0], [0], [1], [0, 0, 1, 1], [], []>} : vector<8x8xf32>, vector<8x512xf32>, vector<8x512xf32> -> vector<8x512xf32>
    %190 = arith.addf %180, %189 : vector<8x512xf32>
    %c0_129 = arith.constant 0 : index
    %c0_130 = arith.constant 0 : index
    %191 = vector.load %arg5[%c0_129, %c0_130] : memref<8x1xf32, #tpu.memory_space<vmem>>, vector<8x1xf32>
    %192 = vector.broadcast %191 : vector<8x1xf32> to vector<8x512xf32>
    %193 = arith.addf %190, %192 : vector<8x512xf32>
    %cst_131 = arith.constant 0.000000e+00 : f32
    %194 = vector.broadcast %cst_131 : f32 to vector<8x512xf32>
    %195 = arith.maximumf %193, %194 : vector<8x512xf32>
    %196 = vector.extract_strided_slice %195 {offsets = [0, 0], sizes = [8, 256], strides = [1, 1]} : vector<8x512xf32> to vector<8x256xf32>
    %c0_132 = arith.constant 0 : index
    %c0_133 = arith.constant 0 : index
    %c0_134 = arith.constant 0 : index
    %197 = vector.load %arg6[%c0_132, %c0_133, %c0_134] : memref<2x8x256xf32, #tpu.memory_space<vmem>>, vector<1x8x256xf32>
    %198 = vector.shape_cast %197 : vector<1x8x256xf32> to vector<8x256xf32>
    %199 = vector.shape_cast %196 : vector<8x256xf32> to vector<1x8x256xf32>
    tpu.vector_store %arg6[%c0_132, %c0_133, %c0_134], %199 {strides = array<i32>} : memref<2x8x256xf32, #tpu.memory_space<vmem>>, vector<1x8x256xf32>,
    %200 = vector.extract_strided_slice %195 {offsets = [0, 256], sizes = [8, 256], strides = [1, 1]} : vector<8x512xf32> to vector<8x256xf32>
    %c1_135 = arith.constant 1 : index
    %c0_136 = arith.constant 0 : index
    %c0_137 = arith.constant 0 : index
    %201 = vector.load %arg6[%c1_135, %c0_136, %c0_137] : memref<2x8x256xf32, #tpu.memory_space<vmem>>, vector<1x8x256xf32>
    %202 = vector.shape_cast %201 : vector<1x8x256xf32> to vector<8x256xf32>
    %203 = vector.shape_cast %200 : vector<8x256xf32> to vector<1x8x256xf32>
    tpu.vector_store %arg6[%c1_135, %c0_136, %c0_137], %203 {strides = array<i32>} : memref<2x8x256xf32, #tpu.memory_space<vmem>>, vector<1x8x256xf32>,
    return
  }
  func.func @transform_0(%arg0: i32) -> (i32, i32, i32) {
    %c0_i32 = arith.constant 0 : i32
    %c0_i32_0 = arith.constant 0 : i32
    %c0_i32_1 = arith.constant 0 : i32
    return %arg0, %c0_i32, %c0_i32_0 : i32, i32, i32
  }
  func.func @transform_1(%arg0: i32) -> (i32, i32, i32) {
    %c0_i32 = arith.constant 0 : i32
    %c0_i32_0 = arith.constant 0 : i32
    %c0_i32_1 = arith.constant 0 : i32
    %c0_i32_2 = arith.constant 0 : i32
    return %c0_i32, %c0_i32_0, %c0_i32_1 : i32, i32, i32
  }
  func.func @transform_2(%arg0: i32) -> (i32, i32) {
    %c0_i32 = arith.constant 0 : i32
    %c0_i32_0 = arith.constant 0 : i32
    %c0_i32_1 = arith.constant 0 : i32
    return %c0_i32, %c0_i32_0 : i32, i32
  }
  func.func @transform_3(%arg0: i32) -> (i32, i32, i32) {
    %c0_i32 = arith.constant 0 : i32
    %c0_i32_0 = arith.constant 0 : i32
    %c0_i32_1 = arith.constant 0 : i32
    %c0_i32_2 = arith.constant 0 : i32
    return %c0_i32, %c0_i32_0, %c0_i32_1 : i32, i32, i32
  }
  func.func @transform_4(%arg0: i32) -> (i32, i32) {
    %c0_i32 = arith.constant 0 : i32
    %c0_i32_0 = arith.constant 0 : i32
    %c0_i32_1 = arith.constant 0 : i32
    return %c0_i32, %c0_i32_0 : i32, i32
  }
  func.func @transform_5(%arg0: i32) -> (i32, i32, i32) {
    %c0_i32 = arith.constant 0 : i32
    %c0_i32_0 = arith.constant 0 : i32
    %c0_i32_1 = arith.constant 0 : i32
    return %arg0, %c0_i32, %c0_i32_0 : i32, i32, i32
  }
}

</mosaic_0001>

<llo_original>
// kernel: tpu_custom_call.1
$region0: #{tpu_custom_call.1}
  #allocation0 [shape = 'u32[]', space=smem, size = 0x4, offset = 0x4, fixed_abs, tag = 'smem constant byte address 0x4 - core index']
  #allocation1 [shape = 'u32[72,128]{1,0:T(1,128)}', space=vmem, size = 0x9000, scoped, tag = 'internal scratch']
  #allocation2 [shape = 'f32[4,768]{1,0:T(4,128)}', space=vmem, size = 0x3000, scoped, tag = 'scratch operand']
  #allocation3 [shape = 'f32[8,768]{1,0:T(8,128)}', space=vmem, size = 0x6000, scoped, tag = 'scratch operand']
  %s0 = inlined_call_operand.vmem [shape: f32[2,4,256], index: 0, kind: input, shape index: {}]
  %s1 = inlined_call_operand.vmem [shape: f32[9,8,4], index: 1, kind: input, shape index: {}]
  %s2 = inlined_call_operand.vmem [shape: f32[8,1], index: 2, kind: input, shape index: {}]
  %s3 = inlined_call_operand.vmem [shape: f32[9,8,8], index: 3, kind: input, shape index: {}]
  %s4 = inlined_call_operand.vmem [shape: f32[8,1], index: 4, kind: input, shape index: {}]
  %s5 = inlined_call_operand.hbm [shape: f32[2,8,256], index: 5, kind: output, shape index: {}]
  %s6 = sld [smem:[#allocation0]]
  $region30: #{tpu_custom_call.1} parent=0
    _
  %s8 = ssub.s32 1, %s6
  %s9 = scalar_select 0, %s8, %s6
  $region1: #{tpu_custom_call.1} parent=0
    #allocation4 [shape = 'u8[16384]{0}', space=vmem, size = 0x4000, scoped, tag = 'output window, operand 0, single buffered']
    #allocation5 [shape = 's32[1]{0}', space=sflag, size = 0x4, scoped, tag = 'scoped memory for tpu_custom_call.1']
    %10 = vsyncpa [#allocation5], 0
    // Predicated region
    $region2: #{tpu_custom_call.1} parent=1 // pred_check
      _
    $region3: #{tpu_custom_call.1} parent=1 // pred_check_branch
      %12 = sbr.rel (0) target = $region5
    $region4: #{tpu_custom_call.1} parent=1 // pred_region
      _
    $region5: #{tpu_custom_call.1} parent=1 // pred_fallthru
      _
    // Predicated region
    $region6: #{tpu_custom_call.1} parent=1 // pred_check
      _
    $region7: #{tpu_custom_call.1} parent=1 // pred_check_branch
      %14 = sbr.rel (0) target = $region9
    $region8: #{tpu_custom_call.1} parent=1 // pred_region
      _
    $region9: #{tpu_custom_call.1} parent=1 // pred_fallthru
      _
    // Predicated region
    $region10: #{tpu_custom_call.1} parent=1 // pred_check
      _
    $region11: #{tpu_custom_call.1} parent=1 // pred_check_branch
      %16 = sbr.rel (0) target = $region13
    $region12: #{tpu_custom_call.1} parent=1 // pred_region
      _
    $region13: #{tpu_custom_call.1} parent=1 // pred_fallthru
      _
    // Predicated region
    $region14: #{tpu_custom_call.1} parent=1 // pred_check
      _
    $region15: #{tpu_custom_call.1} parent=1 // pred_check_branch
      %18 = sbr.rel (0) target = $region17
    $region16: #{tpu_custom_call.1} parent=1 // pred_region
      _
    $region17: #{tpu_custom_call.1} parent=1 // pred_fallthru
      _
    // Predicated region
    $region18: #{tpu_custom_call.1} parent=1 // pred_check
      _
    $region19: #{tpu_custom_call.1} parent=1 // pred_check_branch
      %20 = sbr.rel (0) target = $region21
    $region20: #{tpu_custom_call.1} parent=1 // pred_region
      _
    $region21: #{tpu_custom_call.1} parent=1 // pred_fallthru
      _
    %v21 = vlaneseq
    %v22 = vand.u32 %v21, 127
    %v23 = vadd.s32 %v22, 128
    %v24 = vadd.s32 %v22, 256
    %v25 = vadd.s32 %v22, 384
    %v26 = vand.u32 %v22, 255
    %v27 = vand.u32 %v23, 255
    %v28 = vand.u32 %v24, 255
    %v29 = vand.u32 %v25, 255
    %v30 = vand.u32 %v26, 15
    %v31 = vand.u32 %v27, 15
    %v32 = vand.u32 %v28, 15
    %v33 = vand.u32 %v29, 15
    %vm34 = vcmp.ge.s32.totalorder %v26, 16
    %vm35 = vcmp.ge.s32.totalorder %v27, 16
    %vm36 = vcmp.ge.s32.totalorder %v28, 16
    %vm37 = vcmp.ge.s32.totalorder %v29, 16
    %vm38 = vcmp.lt.s32.totalorder %v26, 240
    %vm39 = vcmp.lt.s32.totalorder %v27, 240
    %vm40 = vcmp.lt.s32.totalorder %v28, 240
    %vm41 = vcmp.lt.s32.totalorder %v29, 240
    %vm42 = vcmp.ge.s32.totalorder %v30, 1
    %vm43 = vcmp.ge.s32.totalorder %v31, 1
    %vm44 = vcmp.ge.s32.totalorder %v32, 1
    %vm45 = vcmp.ge.s32.totalorder %v33, 1
    %vm46 = vcmp.lt.s32.totalorder %v30, 15
    %vm47 = vcmp.lt.s32.totalorder %v31, 15
    %vm48 = vcmp.lt.s32.totalorder %v32, 15
    %vm49 = vcmp.lt.s32.totalorder %v33, 15
    %50 = vst [vmem:[#allocation2] sm:$0xf] 0.0
    %51 = vst [vmem:[#allocation2 + $0x14] sm:$0xf] 0.0
    %v52 = vld [vmem:[%s0] sm:$0xff]
    %53 = vst [vmem:[#allocation2 + $0x4] sm:$0xff] %v52
    %s54 = scalar_lea.vmem %s0, 8
    %v55 = vld [vmem:[%s54] sm:$0xff]
    %56 = vst [vmem:[#allocation2 + $0xc] sm:$0xff] %v55
    %v57 = vld [vmem:[#allocation2] sm:$0xff]
    %v58 = vld [vmem:[#allocation2 + $0x8] sm:$0xff]
    %v59 = vld [vmem:[#allocation2 + $0x10] sm:$0xf]
    %vm60 = vmand %vm34, %vm42
    %vm61 = vmand %vm35, %vm43
    %vm62 = vmand %vm36, %vm44
    %vm63 = vmand %vm37, %vm45
    %v64 = vsel %vm60, 1, 0
    %v65 = vsel %vm61, 1, 0
    %v66 = vsel %vm62, 1, 0
    %v67 = vsel %vm63, 1, 0
    %vm68 = vcmp.eq.s32.totalorder %v64, 1
    %vm69 = vcmp.eq.s32.totalorder %v65, 1
    %vm70 = vcmp.eq.s32.totalorder %v66, 1
    %vm71 = vcmp.eq.s32.totalorder %v67, 1
    %75 = vst [vmem:[#allocation1] ss:$2 sm:$0xff] %v57
    %s76 = scalar_lea.vmem [#allocation1], 16
    %77 = vst [vmem:[%s76] ss:$2 sm:$0xff] %v58
    %s78 = scalar_lea.vmem [#allocation1], 32
    %79 = vst [vmem:[%s78] ss:$2 sm:$0xff] %v59
    %v80 = vld.sshfl [vmem:[#allocation1] sm:$0xff pattern:$0x75316420]
    %v81 = vld.sshfl [vmem:[#allocation1 + $0x8] sm:$0xff pattern:$0x75316420]
    %v82 = vld.sshfl [vmem:[#allocation1 + $0x10] sm:$0xff pattern:$0x75316420]
    %v83 = vld.sshfl [vmem:[#allocation1 + $0x18] sm:$0xff pattern:$0x75316420]
    %v84 = vld.sshfl [vmem:[#allocation1 + $0x20] sm:$0xff pattern:$0x75316420]
    %85 = vrot.lane.b32.xlu0 %v80, 17
    %v86 = vpop.permute.xlu0 %85
    %87 = vrot.lane.b32.xlu0 %v81, 17
    %v88 = vpop.permute.xlu0 %87
    %89 = vrot.lane.b32.xlu0 %v82, 17
    %v90 = vpop.permute.xlu0 %89
    %91 = vrot.lane.b32.xlu0 %v83, 17
    %v92 = vpop.permute.xlu0 %91
    %93 = vrot.lane.b32.xlu0 %v84, 17
    %v94 = vpop.permute.xlu0 %93
    %vm95 = vcmask 138240
    %v96 = vsel %vm95, %v86, %v88
    %v97 = vsel %vm95, %v88, %v90
    %v98 = vsel %vm95, %v90, %v92
    %v99 = vsel %vm95, %v92, %v94
    %v104 = vsel %vm68, %v96, 0.0
    %v105 = vsel %vm69, %v97, 0.0
    %v106 = vsel %vm70, %v98, 0.0
    %v107 = vsel %vm71, %v99, 0.0
    %v108 = vld [vmem:[%s1] sm:$0xff]
    %v109 = vld [vmem:[#allocation2] sm:$0xff]
    %v110 = vld [vmem:[#allocation2 + $0x8] sm:$0xff]
    %v111 = vld [vmem:[#allocation2 + $0x10] sm:$0xf]
    %v112 = vsel %vm34, 1, 0
    %v113 = vsel %vm35, 1, 0
    %v114 = vsel %vm36, 1, 0
    %v115 = vsel %vm37, 1, 0
    %vm116 = vcmp.eq.s32.totalorder %v112, 1
    %vm117 = vcmp.eq.s32.totalorder %v113, 1
    %vm118 = vcmp.eq.s32.totalorder %v114, 1
    %vm119 = vcmp.eq.s32.totalorder %v115, 1
    %123 = vst [vmem:[#allocation1] ss:$2 sm:$0xff] %v109
    %s124 = scalar_lea.vmem [#allocation1], 16
    %125 = vst [vmem:[%s124] ss:$2 sm:$0xff] %v110
    %s126 = scalar_lea.vmem [#allocation1], 32
    %127 = vst [vmem:[%s126] ss:$2 sm:$0xff] %v111
    %v128 = vld.sshfl [vmem:[#allocation1] sm:$0xff pattern:$0x75316420]
    %v129 = vld.sshfl [vmem:[#allocation1 + $0x8] sm:$0xff pattern:$0x75316420]
    %v130 = vld.sshfl [vmem:[#allocation1 + $0x10] sm:$0xff pattern:$0x75316420]
    %v131 = vld.sshfl [vmem:[#allocation1 + $0x18] sm:$0xff pattern:$0x75316420]
    %v132 = vld.sshfl [vmem:[#allocation1 + $0x20] sm:$0xff pattern:$0x75316420]
    %133 = vrot.lane.b32.xlu0 %v128, 16
    %v134 = vpop.permute.xlu0 %133
    %135 = vrot.lane.b32.xlu0 %v129, 16
    %v136 = vpop.permute.xlu0 %135
    %137 = vrot.lane.b32.xlu0 %v130, 16
    %v138 = vpop.permute.xlu0 %137
    %139 = vrot.lane.b32.xlu0 %v131, 16
    %v140 = vpop.permute.xlu0 %139
    %141 = vrot.lane.b32.xlu0 %v132, 16
    %v142 = vpop.permute.xlu0 %141
    %vm143 = vcmask 130048
    %v144 = vsel %vm143, %v134, %v136
    %v145 = vsel %vm143, %v136, %v138
    %v146 = vsel %vm143, %v138, %v140
    %v147 = vsel %vm143, %v140, %v142
    %v152 = vsel %vm116, %v144, 0.0
    %v153 = vsel %vm117, %v145, 0.0
    %v154 = vsel %vm118, %v146, 0.0
    %v155 = vsel %vm119, %v147, 0.0
    %s156 = scalar_lea.vmem %s1, 8
    %v157 = vld [vmem:[%s156] sm:$0xff]
    %vm158 = vcmask 31744
    %v160 = vsel %vm158, %v157, 0
    %vm162 = vcmask 1043456
    %v164 = vsel %vm162, %v152, 0
    %v167 = vsel %vm162, %v153, 0
    %v170 = vsel %vm162, %v154, 0
    %v173 = vsel %vm162, %v155, 0
    %175 = vmatpush.msra.mxu0 0.0
    %176 = vmatpush.msra.mxu0 0.0
    %177 = vmatpush.msra.mxu0 0.0
    %178 = vmatpush.msra.mxu0 0.0
    %179 = vmatpush.msra.mxu0 0.0
    %180 = vmatpush.msra.mxu0 0.0
    %181 = vmatpush.msra.mxu0 0.0
    %182 = vmatpush.msra.mxu0 0.0
    %183 = vmatpush.msra.mxu0 0.0
    %184 = vmatpush.msra.mxu0 0.0
    %185 = vmatpush.msra.mxu0 0.0
    %186 = vmatpush.msra.mxu0 0.0
    %187 = vmatpush.msra.mxu0 0.0
    %188 = vmatpush.msra.mxu0 0.0
    %189 = vmatpush.msra.mxu0 0.0
    %190 = vmatpush.msra.mxu0 %v164
    %191 = vmatmul.f32.gmra.mxu0 %v160
    %v192 = vpop.f32.mrf.mxu0
    %v193 = vadd.f32 0.0, %v192
    %194 = vdwg.mxu0
    %195 = vmatpush.msra.mxu0 0.0
    %196 = vmatpush.msra.mxu0 0.0
    %197 = vmatpush.msra.mxu0 0.0
    %198 = vmatpush.msra.mxu0 0.0
    %199 = vmatpush.msra.mxu0 0.0
    %200 = vmatpush.msra.mxu0 0.0
    %201 = vmatpush.msra.mxu0 0.0
    %202 = vmatpush.msra.mxu0 0.0
    %203 = vmatpush.msra.mxu0 0.0
    %204 = vmatpush.msra.mxu0 0.0
    %205 = vmatpush.msra.mxu0 0.0
    %206 = vmatpush.msra.mxu0 0.0
    %207 = vmatpush.msra.mxu0 0.0
    %208 = vmatpush.msra.mxu0 0.0
    %209 = vmatpush.msra.mxu0 0.0
    %210 = vmatpush.msra.mxu0 %v167
    %211 = vmatmul.f32.gmra.mxu0 %v160
    %v212 = vpop.f32.mrf.mxu0
    %v213 = vadd.f32 0.0, %v212
    %214 = vdwg.mxu0
    %215 = vmatpush.msra.mxu0 0.0
    %216 = vmatpush.msra.mxu0 0.0
    %217 = vmatpush.msra.mxu0 0.0
    %218 = vmatpush.msra.mxu0 0.0
    %219 = vmatpush.msra.mxu0 0.0
    %220 = vmatpush.msra.mxu0 0.0
    %221 = vmatpush.msra.mxu0 0.0
    %222 = vmatpush.msra.mxu0 0.0
    %223 = vmatpush.msra.mxu0 0.0
    %224 = vmatpush.msra.mxu0 0.0
    %225 = vmatpush.msra.mxu0 0.0
    %226 = vmatpush.msra.mxu0 0.0
    %227 = vmatpush.msra.mxu0 0.0
    %228 = vmatpush.msra.mxu0 0.0
    %229 = vmatpush.msra.mxu0 0.0
    %230 = vmatpush.msra.mxu0 %v170
    %231 = vmatmul.f32.gmra.mxu0 %v160
    %v232 = vpop.f32.mrf.mxu0
    %v233 = vadd.f32 0.0, %v232
    %234 = vdwg.mxu0
    %235 = vmatpush.msra.mxu0 0.0
    %236 = vmatpush.msra.mxu0 0.0
    %237 = vmatpush.msra.mxu0 0.0
    %238 = vmatpush.msra.mxu0 0.0
    %239 = vmatpush.msra.mxu0 0.0
    %240 = vmatpush.msra.mxu0 0.0
    %241 = vmatpush.msra.mxu0 0.0
    %242 = vmatpush.msra.mxu0 0.0
    %243 = vmatpush.msra.mxu0 0.0
    %244 = vmatpush.msra.mxu0 0.0
    %245 = vmatpush.msra.mxu0 0.0
    %246 = vmatpush.msra.mxu0 0.0
    %247 = vmatpush.msra.mxu0 0.0
    %248 = vmatpush.msra.mxu0 0.0
    %249 = vmatpush.msra.mxu0 0.0
    %250 = vmatpush.msra.mxu0 %v173
    %251 = vmatmul.f32.gmra.mxu0 %v160
    %v252 = vpop.f32.mrf.mxu0
    %v253 = vadd.f32 0.0, %v252
    %254 = vdwg.mxu0
    %v256 = vsel %vm158, %v108, 0
    %v259 = vsel %vm162, %v104, 0
    %v262 = vsel %vm162, %v105, 0
    %v265 = vsel %vm162, %v106, 0
    %v268 = vsel %vm162, %v107, 0
    %270 = vmatpush.msra.mxu0 0.0
    %271 = vmatpush.msra.mxu0 0.0
    %272 = vmatpush.msra.mxu0 0.0
    %273 = vmatpush.msra.mxu0 0.0
    %274 = vmatpush.msra.mxu0 0.0
    %275 = vmatpush.msra.mxu0 0.0
    %276 = vmatpush.msra.mxu0 0.0
    %277 = vmatpush.msra.mxu0 0.0
    %278 = vmatpush.msra.mxu0 0.0
    %279 = vmatpush.msra.mxu0 0.0
    %280 = vmatpush.msra.mxu0 0.0
    %281 = vmatpush.msra.mxu0 0.0
    %282 = vmatpush.msra.mxu0 0.0
    %283 = vmatpush.msra.mxu0 0.0
    %284 = vmatpush.msra.mxu0 0.0
    %285 = vmatpush.msra.mxu0 %v259
    %286 = vmatmul.f32.gmra.mxu0 %v256
    %v287 = vpop.f32.mrf.mxu0
    %v288 = vadd.f32 %v193, %v287
    %289 = vdwg.mxu0
    %290 = vmatpush.msra.mxu0 0.0
    %291 = vmatpush.msra.mxu0 0.0
    %292 = vmatpush.msra.mxu0 0.0
    %293 = vmatpush.msra.mxu0 0.0
    %294 = vmatpush.msra.mxu0 0.0
    %295 = vmatpush.msra.mxu0 0.0
    %296 = vmatpush.msra.mxu0 0.0
    %297 = vmatpush.msra.mxu0 0.0
    %298 = vmatpush.msra.mxu0 0.0
    %299 = vmatpush.msra.mxu0 0.0
    %300 = vmatpush.msra.mxu0 0.0
    %301 = vmatpush.msra.mxu0 0.0
    %302 = vmatpush.msra.mxu0 0.0
    %303 = vmatpush.msra.mxu0 0.0
    %304 = vmatpush.msra.mxu0 0.0
    %305 = vmatpush.msra.mxu0 %v262
    %306 = vmatmul.f32.gmra.mxu0 %v256
    %v307 = vpop.f32.mrf.mxu0
    %v308 = vadd.f32 %v213, %v307
    %309 = vdwg.mxu0
    %310 = vmatpush.msra.mxu0 0.0
    %311 = vmatpush.msra.mxu0 0.0
    %312 = vmatpush.msra.mxu0 0.0
    %313 = vmatpush.msra.mxu0 0.0
    %314 = vmatpush.msra.mxu0 0.0
    %315 = vmatpush.msra.mxu0 0.0
    %316 = vmatpush.msra.mxu0 0.0
    %317 = vmatpush.msra.mxu0 0.0
    %318 = vmatpush.msra.mxu0 0.0
    %319 = vmatpush.msra.mxu0 0.0
    %320 = vmatpush.msra.mxu0 0.0
    %321 = vmatpush.msra.mxu0 0.0
    %322 = vmatpush.msra.mxu0 0.0
    %323 = vmatpush.msra.mxu0 0.0
    %324 = vmatpush.msra.mxu0 0.0
    %325 = vmatpush.msra.mxu0 %v265
    %326 = vmatmul.f32.gmra.mxu0 %v256
    %v327 = vpop.f32.mrf.mxu0
    %v328 = vadd.f32 %v233, %v327
    %329 = vdwg.mxu0
    %330 = vmatpush.msra.mxu0 0.0
    %331 = vmatpush.msra.mxu0 0.0
    %332 = vmatpush.msra.mxu0 0.0
    %333 = vmatpush.msra.mxu0 0.0
    %334 = vmatpush.msra.mxu0 0.0
    %335 = vmatpush.msra.mxu0 0.0
    %336 = vmatpush.msra.mxu0 0.0
    %337 = vmatpush.msra.mxu0 0.0
    %338 = vmatpush.msra.mxu0 0.0
    %339 = vmatpush.msra.mxu0 0.0
    %340 = vmatpush.msra.mxu0 0.0
    %341 = vmatpush.msra.mxu0 0.0
    %342 = vmatpush.msra.mxu0 0.0
    %343 = vmatpush.msra.mxu0 0.0
    %344 = vmatpush.msra.mxu0 0.0
    %345 = vmatpush.msra.mxu0 %v268
    %346 = vmatmul.f32.gmra.mxu0 %v256
    %v347 = vpop.f32.mrf.mxu0
    %v348 = vadd.f32 %v253, %v347
    %349 = vdwg.mxu0
    %v350 = vld [vmem:[#allocation2] sm:$0xff]
    %v351 = vld [vmem:[#allocation2 + $0x8] sm:$0xff]
    %v352 = vld [vmem:[#allocation2 + $0x10] sm:$0xf]
    %vm353 = vmand %vm34, %vm46
    %vm354 = vmand %vm35, %vm47
    %vm355 = vmand %vm36, %vm48
    %vm356 = vmand %vm37, %vm49
    %v357 = vsel %vm353, 1, 0
    %v358 = vsel %vm354, 1, 0
    %v359 = vsel %vm355, 1, 0
    %v360 = vsel %vm356, 1, 0
    %vm361 = vcmp.eq.s32.totalorder %v357, 1
    %vm362 = vcmp.eq.s32.totalorder %v358, 1
    %vm363 = vcmp.eq.s32.totalorder %v359, 1
    %vm364 = vcmp.eq.s32.totalorder %v360, 1
    %368 = vst [vmem:[#allocation1] ss:$2 sm:$0xff] %v350
    %s369 = scalar_lea.vmem [#allocation1], 16
    %370 = vst [vmem:[%s369] ss:$2 sm:$0xff] %v351
    %s371 = scalar_lea.vmem [#allocation1], 32
    %372 = vst [vmem:[%s371] ss:$2 sm:$0xff] %v352
    %v373 = vld.sshfl [vmem:[#allocation1] sm:$0xff pattern:$0x75316420]
    %v374 = vld.sshfl [vmem:[#allocation1 + $0x8] sm:$0xff pattern:$0x75316420]
    %v375 = vld.sshfl [vmem:[#allocation1 + $0x10] sm:$0xff pattern:$0x75316420]
    %v376 = vld.sshfl [vmem:[#allocation1 + $0x18] sm:$0xff pattern:$0x75316420]
    %v377 = vld.sshfl [vmem:[#allocation1 + $0x20] sm:$0xff pattern:$0x75316420]
    %378 = vrot.lane.b32.xlu0 %v373, 15
    %v379 = vpop.permute.xlu0 %378
    %380 = vrot.lane.b32.xlu0 %v374, 15
    %v381 = vpop.permute.xlu0 %380
    %382 = vrot.lane.b32.xlu0 %v375, 15
    %v383 = vpop.permute.xlu0 %382
    %384 = vrot.lane.b32.xlu0 %v376, 15
    %v385 = vpop.permute.xlu0 %384
    %386 = vrot.lane.b32.xlu0 %v377, 15
    %v387 = vpop.permute.xlu0 %386
    %vm388 = vcmask 121856
    %v389 = vsel %vm388, %v379, %v381
    %v390 = vsel %vm388, %v381, %v383
    %v391 = vsel %vm388, %v383, %v385
    %v392 = vsel %vm388, %v385, %v387
    %v397 = vsel %vm361, %v389, 0.0
    %v398 = vsel %vm362, %v390, 0.0
    %v399 = vsel %vm363, %v391, 0.0
    %v400 = vsel %vm364, %v392, 0.0
    %s401 = scalar_lea.vmem %s1, 16
    %v402 = vld [vmem:[%s401] sm:$0xff]
    %v404 = vsel %vm158, %v402, 0
    %v407 = vsel %vm162, %v397, 0
    %v410 = vsel %vm162, %v398, 0
    %v413 = vsel %vm162, %v399, 0
    %v416 = vsel %vm162, %v400, 0
    %418 = vmatpush.msra.mxu0 0.0
    %419 = vmatpush.msra.mxu0 0.0
    %420 = vmatpush.msra.mxu0 0.0
    %421 = vmatpush.msra.mxu0 0.0
    %422 = vmatpush.msra.mxu0 0.0
    %423 = vmatpush.msra.mxu0 0.0
    %424 = vmatpush.msra.mxu0 0.0
    %425 = vmatpush.msra.mxu0 0.0
    %426 = vmatpush.msra.mxu0 0.0
    %427 = vmatpush.msra.mxu0 0.0
    %428 = vmatpush.msra.mxu0 0.0
    %429 = vmatpush.msra.mxu0 0.0
    %430 = vmatpush.msra.mxu0 0.0
    %431 = vmatpush.msra.mxu0 0.0
    %432 = vmatpush.msra.mxu0 0.0
    %433 = vmatpush.msra.mxu0 %v407
    %434 = vmatmul.f32.gmra.mxu0 %v404
    %v435 = vpop.f32.mrf.mxu0
    %v436 = vadd.f32 0.0, %v435
    %437 = vdwg.mxu0
    %438 = vmatpush.msra.mxu0 0.0
    %439 = vmatpush.msra.mxu0 0.0
    %440 = vmatpush.msra.mxu0 0.0
    %441 = vmatpush.msra.mxu0 0.0
    %442 = vmatpush.msra.mxu0 0.0
    %443 = vmatpush.msra.mxu0 0.0
    %444 = vmatpush.msra.mxu0 0.0
    %445 = vmatpush.msra.mxu0 0.0
    %446 = vmatpush.msra.mxu0 0.0
    %447 = vmatpush.msra.mxu0 0.0
    %448 = vmatpush.msra.mxu0 0.0
    %449 = vmatpush.msra.mxu0 0.0
    %450 = vmatpush.msra.mxu0 0.0
    %451 = vmatpush.msra.mxu0 0.0
    %452 = vmatpush.msra.mxu0 0.0
    %453 = vmatpush.msra.mxu0 %v410
    %454 = vmatmul.f32.gmra.mxu0 %v404
    %v455 = vpop.f32.mrf.mxu0
    %v456 = vadd.f32 0.0, %v455
    %457 = vdwg.mxu0
    %458 = vmatpush.msra.mxu0 0.0
    %459 = vmatpush.msra.mxu0 0.0
    %460 = vmatpush.msra.mxu0 0.0
    %461 = vmatpush.msra.mxu0 0.0
    %462 = vmatpush.msra.mxu0 0.0
    %463 = vmatpush.msra.mxu0 0.0
    %464 = vmatpush.msra.mxu0 0.0
    %465 = vmatpush.msra.mxu0 0.0
    %466 = vmatpush.msra.mxu0 0.0
    %467 = vmatpush.msra.mxu0 0.0
    %468 = vmatpush.msra.mxu0 0.0
    %469 = vmatpush.msra.mxu0 0.0
    %470 = vmatpush.msra.mxu0 0.0
    %471 = vmatpush.msra.mxu0 0.0
    %472 = vmatpush.msra.mxu0 0.0
    %473 = vmatpush.msra.mxu0 %v413
    %474 = vmatmul.f32.gmra.mxu0 %v404
    %v475 = vpop.f32.mrf.mxu0
    %v476 = vadd.f32 0.0, %v475
    %477 = vdwg.mxu0
    %478 = vmatpush.msra.mxu0 0.0
    %479 = vmatpush.msra.mxu0 0.0
    %480 = vmatpush.msra.mxu0 0.0
    %481 = vmatpush.msra.mxu0 0.0
    %482 = vmatpush.msra.mxu0 0.0
    %483 = vmatpush.msra.mxu0 0.0
    %484 = vmatpush.msra.mxu0 0.0
    %485 = vmatpush.msra.mxu0 0.0
    %486 = vmatpush.msra.mxu0 0.0
    %487 = vmatpush.msra.mxu0 0.0
    %488 = vmatpush.msra.mxu0 0.0
    %489 = vmatpush.msra.mxu0 0.0
    %490 = vmatpush.msra.mxu0 0.0
    %491 = vmatpush.msra.mxu0 0.0
    %492 = vmatpush.msra.mxu0 0.0
    %493 = vmatpush.msra.mxu0 %v416
    %494 = vmatmul.f32.gmra.mxu0 %v404
    %v495 = vpop.f32.mrf.mxu0
    %v496 = vadd.f32 0.0, %v495
    %497 = vdwg.mxu0
    %v498 = vadd.f32 %v288, %v436
    %v499 = vadd.f32 %v308, %v456
    %v500 = vadd.f32 %v328, %v476
    %v501 = vadd.f32 %v348, %v496
    %v502 = vld [vmem:[#allocation2] sm:$0xff]
    %v503 = vld [vmem:[#allocation2 + $0x8] sm:$0xff]
    %v504 = vld [vmem:[#allocation2 + $0x10] sm:$0xf]
    %v505 = vsel %vm42, 1, 0
    %v506 = vsel %vm43, 1, 0
    %v507 = vsel %vm44, 1, 0
    %v508 = vsel %vm45, 1, 0
    %vm509 = vcmp.eq.s32.totalorder %v505, 1
    %vm510 = vcmp.eq.s32.totalorder %v506, 1
    %vm511 = vcmp.eq.s32.totalorder %v507, 1
    %vm512 = vcmp.eq.s32.totalorder %v508, 1
    %516 = vst [vmem:[#allocation1] ss:$2 sm:$0xff] %v502
    %s517 = scalar_lea.vmem [#allocation1], 16
    %518 = vst [vmem:[%s517] ss:$2 sm:$0xff] %v503
    %s519 = scalar_lea.vmem [#allocation1], 32
    %520 = vst [vmem:[%s519] ss:$2 sm:$0xff] %v504
    %v521 = vld.sshfl [vmem:[#allocation1] sm:$0xff pattern:$0x75316420]
    %v522 = vld.sshfl [vmem:[#allocation1 + $0x8] sm:$0xff pattern:$0x75316420]
    %v523 = vld.sshfl [vmem:[#allocation1 + $0x10] sm:$0xff pattern:$0x75316420]
    %v524 = vld.sshfl [vmem:[#allocation1 + $0x18] sm:$0xff pattern:$0x75316420]
    %v525 = vld.sshfl [vmem:[#allocation1 + $0x20] sm:$0xff pattern:$0x75316420]
    %526 = vrot.lane.b32.xlu0 %v521, 1
    %v527 = vpop.permute.xlu0 %526
    %528 = vrot.lane.b32.xlu0 %v522, 1
    %v529 = vpop.permute.xlu0 %528
    %530 = vrot.lane.b32.xlu0 %v523, 1
    %v531 = vpop.permute.xlu0 %530
    %532 = vrot.lane.b32.xlu0 %v524, 1
    %v533 = vpop.permute.xlu0 %532
    %534 = vrot.lane.b32.xlu0 %v525, 1
    %v535 = vpop.permute.xlu0 %534
    %vm536 = vcmask 7168
    %v537 = vsel %vm536, %v527, %v529
    %v538 = vsel %vm536, %v529, %v531
    %v539 = vsel %vm536, %v531, %v533
    %v540 = vsel %vm536, %v533, %v535
    %v545 = vsel %vm509, %v537, 0.0
    %v546 = vsel %vm510, %v538, 0.0
    %v547 = vsel %vm511, %v539, 0.0
    %v548 = vsel %vm512, %v540, 0.0
    %s549 = scalar_lea.vmem %s1, 24
    %v550 = vld [vmem:[%s549] sm:$0xff]
    %v552 = vsel %vm158, %v550, 0
    %v555 = vsel %vm162, %v545, 0
    %v558 = vsel %vm162, %v546, 0
    %v561 = vsel %vm162, %v547, 0
    %v564 = vsel %vm162, %v548, 0
    %566 = vmatpush.msra.mxu0 0.0
    %567 = vmatpush.msra.mxu0 0.0
    %568 = vmatpush.msra.mxu0 0.0
    %569 = vmatpush.msra.mxu0 0.0
    %570 = vmatpush.msra.mxu0 0.0
    %571 = vmatpush.msra.mxu0 0.0
    %572 = vmatpush.msra.mxu0 0.0
    %573 = vmatpush.msra.mxu0 0.0
    %574 = vmatpush.msra.mxu0 0.0
    %575 = vmatpush.msra.mxu0 0.0
    %576 = vmatpush.msra.mxu0 0.0
    %577 = vmatpush.msra.mxu0 0.0
    %578 = vmatpush.msra.mxu0 0.0
    %579 = vmatpush.msra.mxu0 0.0
    %580 = vmatpush.msra.mxu0 0.0
    %581 = vmatpush.msra.mxu0 %v555
    %582 = vmatmul.f32.gmra.mxu0 %v552
    %v583 = vpop.f32.mrf.mxu0
    %v584 = vadd.f32 0.0, %v583
    %585 = vdwg.mxu0
    %586 = vmatpush.msra.mxu0 0.0
    %587 = vmatpush.msra.mxu0 0.0
    %588 = vmatpush.msra.mxu0 0.0
    %589 = vmatpush.msra.mxu0 0.0
    %590 = vmatpush.msra.mxu0 0.0
    %591 = vmatpush.msra.mxu0 0.0
    %592 = vmatpush.msra.mxu0 0.0
    %593 = vmatpush.msra.mxu0 0.0
    %594 = vmatpush.msra.mxu0 0.0
    %595 = vmatpush.msra.mxu0 0.0
    %596 = vmatpush.msra.mxu0 0.0
    %597 = vmatpush.msra.mxu0 0.0
    %598 = vmatpush.msra.mxu0 0.0
    %599 = vmatpush.msra.mxu0 0.0
    %600 = vmatpush.msra.mxu0 0.0
    %601 = vmatpush.msra.mxu0 %v558
    %602 = vmatmul.f32.gmra.mxu0 %v552
    %v603 = vpop.f32.mrf.mxu0
    %v604 = vadd.f32 0.0, %v603
    %605 = vdwg.mxu0
    %606 = vmatpush.msra.mxu0 0.0
    %607 = vmatpush.msra.mxu0 0.0
    %608 = vmatpush.msra.mxu0 0.0
    %609 = vmatpush.msra.mxu0 0.0
    %610 = vmatpush.msra.mxu0 0.0
    %611 = vmatpush.msra.mxu0 0.0
    %612 = vmatpush.msra.mxu0 0.0
    %613 = vmatpush.msra.mxu0 0.0
    %614 = vmatpush.msra.mxu0 0.0
    %615 = vmatpush.msra.mxu0 0.0
    %616 = vmatpush.msra.mxu0 0.0
    %617 = vmatpush.msra.mxu0 0.0
    %618 = vmatpush.msra.mxu0 0.0
    %619 = vmatpush.msra.mxu0 0.0
    %620 = vmatpush.msra.mxu0 0.0
    %621 = vmatpush.msra.mxu0 %v561
    %622 = vmatmul.f32.gmra.mxu0 %v552
    %v623 = vpop.f32.mrf.mxu0
    %v624 = vadd.f32 0.0, %v623
    %625 = vdwg.mxu0
    %626 = vmatpush.msra.mxu0 0.0
    %627 = vmatpush.msra.mxu0 0.0
    %628 = vmatpush.msra.mxu0 0.0
    %629 = vmatpush.msra.mxu0 0.0
    %630 = vmatpush.msra.mxu0 0.0
    %631 = vmatpush.msra.mxu0 0.0
    %632 = vmatpush.msra.mxu0 0.0
    %633 = vmatpush.msra.mxu0 0.0
    %634 = vmatpush.msra.mxu0 0.0
    %635 = vmatpush.msra.mxu0 0.0
    %636 = vmatpush.msra.mxu0 0.0
    %637 = vmatpush.msra.mxu0 0.0
    %638 = vmatpush.msra.mxu0 0.0
    %639 = vmatpush.msra.mxu0 0.0
    %640 = vmatpush.msra.mxu0 0.0
    %641 = vmatpush.msra.mxu0 %v564
    %642 = vmatmul.f32.gmra.mxu0 %v552
    %v643 = vpop.f32.mrf.mxu0
    %v644 = vadd.f32 0.0, %v643
    %645 = vdwg.mxu0
    %v646 = vadd.f32 %v498, %v584
    %v647 = vadd.f32 %v499, %v604
    %v648 = vadd.f32 %v500, %v624
    %v649 = vadd.f32 %v501, %v644
    %v650 = vld [vmem:[#allocation2 + $0x4] sm:$0xff]
    %v651 = vld [vmem:[#allocation2 + $0xc] sm:$0xff]
    %s652 = scalar_lea.vmem %s1, 32
    %v653 = vld [vmem:[%s652] sm:$0xff]
    %656 = vst [vmem:[#allocation1] ss:$2 sm:$0xff] %v650
    %s657 = scalar_lea.vmem [#allocation1], 16
    %658 = vst [vmem:[%s657] ss:$2 sm:$0xff] %v651
    %v659 = vld.sshfl [vmem:[#allocation1] sm:$0xff pattern:$0x75316420]
    %v660 = vld.sshfl [vmem:[#allocation1 + $0x8] sm:$0xff pattern:$0x75316420]
    %v661 = vld.sshfl [vmem:[#allocation1 + $0x10] sm:$0xff pattern:$0x75316420]
    %v662 = vld.sshfl [vmem:[#allocation1 + $0x18] sm:$0xff pattern:$0x75316420]
    %v664 = vsel %vm158, %v653, 0
    %v666 = vsel %vm162, %v659, 0
    %v668 = vsel %vm162, %v660, 0
    %v670 = vsel %vm162, %v661, 0
    %v672 = vsel %vm162, %v662, 0
    %674 = vmatpush.msra.mxu0 0.0
    %675 = vmatpush.msra.mxu0 0.0
    %676 = vmatpush.msra.mxu0 0.0
    %677 = vmatpush.msra.mxu0 0.0
    %678 = vmatpush.msra.mxu0 0.0
    %679 = vmatpush.msra.mxu0 0.0
    %680 = vmatpush.msra.mxu0 0.0
    %681 = vmatpush.msra.mxu0 0.0
    %682 = vmatpush.msra.mxu0 0.0
    %683 = vmatpush.msra.mxu0 0.0
    %684 = vmatpush.msra.mxu0 0.0
    %685 = vmatpush.msra.mxu0 0.0
    %686 = vmatpush.msra.mxu0 0.0
    %687 = vmatpush.msra.mxu0 0.0
    %688 = vmatpush.msra.mxu0 0.0
    %689 = vmatpush.msra.mxu0 %v666
    %690 = vmatmul.f32.gmra.mxu0 %v664
    %v691 = vpop.f32.mrf.mxu0
    %v692 = vadd.f32 0.0, %v691
    %693 = vdwg.mxu0
    %694 = vmatpush.msra.mxu0 0.0
    %695 = vmatpush.msra.mxu0 0.0
    %696 = vmatpush.msra.mxu0 0.0
    %697 = vmatpush.msra.mxu0 0.0
    %698 = vmatpush.msra.mxu0 0.0
    %699 = vmatpush.msra.mxu0 0.0
    %700 = vmatpush.msra.mxu0 0.0
    %701 = vmatpush.msra.mxu0 0.0
    %702 = vmatpush.msra.mxu0 0.0
    %703 = vmatpush.msra.mxu0 0.0
    %704 = vmatpush.msra.mxu0 0.0
    %705 = vmatpush.msra.mxu0 0.0
    %706 = vmatpush.msra.mxu0 0.0
    %707 = vmatpush.msra.mxu0 0.0
    %708 = vmatpush.msra.mxu0 0.0
    %709 = vmatpush.msra.mxu0 %v668
    %710 = vmatmul.f32.gmra.mxu0 %v664
    %v711 = vpop.f32.mrf.mxu0
    %v712 = vadd.f32 0.0, %v711
    %713 = vdwg.mxu0
    %714 = vmatpush.msra.mxu0 0.0
    %715 = vmatpush.msra.mxu0 0.0
    %716 = vmatpush.msra.mxu0 0.0
    %717 = vmatpush.msra.mxu0 0.0
    %718 = vmatpush.msra.mxu0 0.0
    %719 = vmatpush.msra.mxu0 0.0
    %720 = vmatpush.msra.mxu0 0.0
    %721 = vmatpush.msra.mxu0 0.0
    %722 = vmatpush.msra.mxu0 0.0
    %723 = vmatpush.msra.mxu0 0.0
    %724 = vmatpush.msra.mxu0 0.0
    %725 = vmatpush.msra.mxu0 0.0
    %726 = vmatpush.msra.mxu0 0.0
    %727 = vmatpush.msra.mxu0 0.0
    %728 = vmatpush.msra.mxu0 0.0
    %729 = vmatpush.msra.mxu0 %v670
    %730 = vmatmul.f32.gmra.mxu0 %v664
    %v731 = vpop.f32.mrf.mxu0
    %v732 = vadd.f32 0.0, %v731
    %733 = vdwg.mxu0
    %734 = vmatpush.msra.mxu0 0.0
    %735 = vmatpush.msra.mxu0 0.0
    %736 = vmatpush.msra.mxu0 0.0
    %737 = vmatpush.msra.mxu0 0.0
    %738 = vmatpush.msra.mxu0 0.0
    %739 = vmatpush.msra.mxu0 0.0
    %740 = vmatpush.msra.mxu0 0.0
    %741 = vmatpush.msra.mxu0 0.0
    %742 = vmatpush.msra.mxu0 0.0
    %743 = vmatpush.msra.mxu0 0.0
    %744 = vmatpush.msra.mxu0 0.0
    %745 = vmatpush.msra.mxu0 0.0
    %746 = vmatpush.msra.mxu0 0.0
    %747 = vmatpush.msra.mxu0 0.0
    %748 = vmatpush.msra.mxu0 0.0
    %749 = vmatpush.msra.mxu0 %v672
    %750 = vmatmul.f32.gmra.mxu0 %v664
    %v751 = vpop.f32.mrf.mxu0
    %v752 = vadd.f32 0.0, %v751
    %753 = vdwg.mxu0
    %v754 = vadd.f32 %v646, %v692
    %v755 = vadd.f32 %v647, %v712
    %v756 = vadd.f32 %v648, %v732
    %v757 = vadd.f32 %v649, %v752
    %v758 = vld [vmem:[#allocation2 + $0x4] sm:$0xff]
    %v759 = vld [vmem:[#allocation2 + $0xc] sm:$0xff]
    %v760 = vld [vmem:[#allocation2 + $0x14] sm:$0xf]
    %v761 = vsel %vm46, 1, 0
    %v762 = vsel %vm47, 1, 0
    %v763 = vsel %vm48, 1, 0
    %v764 = vsel %vm49, 1, 0
    %vm765 = vcmp.eq.s32.totalorder %v761, 1
    %vm766 = vcmp.eq.s32.totalorder %v762, 1
    %vm767 = vcmp.eq.s32.totalorder %v763, 1
    %vm768 = vcmp.eq.s32.totalorder %v764, 1
    %772 = vst [vmem:[#allocation1] ss:$2 sm:$0xff] %v758
    %s773 = scalar_lea.vmem [#allocation1], 16
    %774 = vst [vmem:[%s773] ss:$2 sm:$0xff] %v759
    %s775 = scalar_lea.vmem [#allocation1], 32
    %776 = vst [vmem:[%s775] ss:$2 sm:$0xff] %v760
    %v777 = vld.sshfl [vmem:[#allocation1] sm:$0xff pattern:$0x75316420]
    %v778 = vld.sshfl [vmem:[#allocation1 + $0x8] sm:$0xff pattern:$0x75316420]
    %v779 = vld.sshfl [vmem:[#allocation1 + $0x10] sm:$0xff pattern:$0x75316420]
    %v780 = vld.sshfl [vmem:[#allocation1 + $0x18] sm:$0xff pattern:$0x75316420]
    %v781 = vld.sshfl [vmem:[#allocation1 + $0x20] sm:$0xff pattern:$0x75316420]
    %782 = vrot.lane.b32.xlu0 %v777, 127
    %v783 = vpop.permute.xlu0 %782
    %784 = vrot.lane.b32.xlu0 %v778, 127
    %v785 = vpop.permute.xlu0 %784
    %786 = vrot.lane.b32.xlu0 %v779, 127
    %v787 = vpop.permute.xlu0 %786
    %788 = vrot.lane.b32.xlu0 %v780, 127
    %v789 = vpop.permute.xlu0 %788
    %790 = vrot.lane.b32.xlu0 %v781, 127
    %v791 = vpop.permute.xlu0 %790
    %vm792 = vcmask 1039360
    %v793 = vsel %vm792, %v783, %v785
    %v794 = vsel %vm792, %v785, %v787
    %v795 = vsel %vm792, %v787, %v789
    %v796 = vsel %vm792, %v789, %v791
    %v801 = vsel %vm765, %v793, 0.0
    %v802 = vsel %vm766, %v794, 0.0
    %v803 = vsel %vm767, %v795, 0.0
    %v804 = vsel %vm768, %v796, 0.0
    %s805 = scalar_lea.vmem %s1, 40
    %v806 = vld [vmem:[%s805] sm:$0xff]
    %v808 = vsel %vm158, %v806, 0
    %v811 = vsel %vm162, %v801, 0
    %v814 = vsel %vm162, %v802, 0
    %v817 = vsel %vm162, %v803, 0
    %v820 = vsel %vm162, %v804, 0
    %822 = vmatpush.msra.mxu0 0.0
    %823 = vmatpush.msra.mxu0 0.0
    %824 = vmatpush.msra.mxu0 0.0
    %825 = vmatpush.msra.mxu0 0.0
    %826 = vmatpush.msra.mxu0 0.0
    %827 = vmatpush.msra.mxu0 0.0
    %828 = vmatpush.msra.mxu0 0.0
    %829 = vmatpush.msra.mxu0 0.0
    %830 = vmatpush.msra.mxu0 0.0
    %831 = vmatpush.msra.mxu0 0.0
    %832 = vmatpush.msra.mxu0 0.0
    %833 = vmatpush.msra.mxu0 0.0
    %834 = vmatpush.msra.mxu0 0.0
    %835 = vmatpush.msra.mxu0 0.0
    %836 = vmatpush.msra.mxu0 0.0
    %837 = vmatpush.msra.mxu0 %v811
    %838 = vmatmul.f32.gmra.mxu0 %v808
    %v839 = vpop.f32.mrf.mxu0
    %v840 = vadd.f32 0.0, %v839
    %841 = vdwg.mxu0
    %842 = vmatpush.msra.mxu0 0.0
    %843 = vmatpush.msra.mxu0 0.0
    %844 = vmatpush.msra.mxu0 0.0
    %845 = vmatpush.msra.mxu0 0.0
    %846 = vmatpush.msra.mxu0 0.0
    %847 = vmatpush.msra.mxu0 0.0
    %848 = vmatpush.msra.mxu0 0.0
    %849 = vmatpush.msra.mxu0 0.0
    %850 = vmatpush.msra.mxu0 0.0
    %851 = vmatpush.msra.mxu0 0.0
    %852 = vmatpush.msra.mxu0 0.0
    %853 = vmatpush.msra.mxu0 0.0
    %854 = vmatpush.msra.mxu0 0.0
    %855 = vmatpush.msra.mxu0 0.0
    %856 = vmatpush.msra.mxu0 0.0
    %857 = vmatpush.msra.mxu0 %v814
    %858 = vmatmul.f32.gmra.mxu0 %v808
    %v859 = vpop.f32.mrf.mxu0
    %v860 = vadd.f32 0.0, %v859
    %861 = vdwg.mxu0
    %862 = vmatpush.msra.mxu0 0.0
    %863 = vmatpush.msra.mxu0 0.0
    %864 = vmatpush.msra.mxu0 0.0
    %865 = vmatpush.msra.mxu0 0.0
    %866 = vmatpush.msra.mxu0 0.0
    %867 = vmatpush.msra.mxu0 0.0
    %868 = vmatpush.msra.mxu0 0.0
    %869 = vmatpush.msra.mxu0 0.0
    %870 = vmatpush.msra.mxu0 0.0
    %871 = vmatpush.msra.mxu0 0.0
    %872 = vmatpush.msra.mxu0 0.0
    %873 = vmatpush.msra.mxu0 0.0
    %874 = vmatpush.msra.mxu0 0.0
    %875 = vmatpush.msra.mxu0 0.0
    %876 = vmatpush.msra.mxu0 0.0
    %877 = vmatpush.msra.mxu0 %v817
    %878 = vmatmul.f32.gmra.mxu0 %v808
    %v879 = vpop.f32.mrf.mxu0
    %v880 = vadd.f32 0.0, %v879
    %881 = vdwg.mxu0
    %882 = vmatpush.msra.mxu0 0.0
    %883 = vmatpush.msra.mxu0 0.0
    %884 = vmatpush.msra.mxu0 0.0
    %885 = vmatpush.msra.mxu0 0.0
    %886 = vmatpush.msra.mxu0 0.0
    %887 = vmatpush.msra.mxu0 0.0
    %888 = vmatpush.msra.mxu0 0.0
    %889 = vmatpush.msra.mxu0 0.0
    %890 = vmatpush.msra.mxu0 0.0
    %891 = vmatpush.msra.mxu0 0.0
    %892 = vmatpush.msra.mxu0 0.0
    %893 = vmatpush.msra.mxu0 0.0
    %894 = vmatpush.msra.mxu0 0.0
    %895 = vmatpush.msra.mxu0 0.0
    %896 = vmatpush.msra.mxu0 0.0
    %897 = vmatpush.msra.mxu0 %v820
    %898 = vmatmul.f32.gmra.mxu0 %v808
    %v899 = vpop.f32.mrf.mxu0
    %v900 = vadd.f32 0.0, %v899
    %901 = vdwg.mxu0
    %v902 = vadd.f32 %v754, %v840
    %v903 = vadd.f32 %v755, %v860
    %v904 = vadd.f32 %v756, %v880
    %v905 = vadd.f32 %v757, %v900
    %v906 = vld [vmem:[#allocation2 + $0x4] sm:$0xff]
    %v907 = vld [vmem:[#allocation2 + $0xc] sm:$0xff]
    %v908 = vld [vmem:[#allocation2 + $0x14] sm:$0xf]
    %vm909 = vmand %vm38, %vm42
    %vm910 = vmand %vm39, %vm43
    %vm911 = vmand %vm40, %vm44
    %vm912 = vmand %vm41, %vm45
    %v913 = vsel %vm909, 1, 0
    %v914 = vsel %vm910, 1, 0
    %v915 = vsel %vm911, 1, 0
    %v916 = vsel %vm912, 1, 0
    %vm917 = vcmp.eq.s32.totalorder %v913, 1
    %vm918 = vcmp.eq.s32.totalorder %v914, 1
    %vm919 = vcmp.eq.s32.totalorder %v915, 1
    %vm920 = vcmp.eq.s32.totalorder %v916, 1
    %924 = vst [vmem:[#allocation1] ss:$2 sm:$0xff] %v906
    %s925 = scalar_lea.vmem [#allocation1], 16
    %926 = vst [vmem:[%s925] ss:$2 sm:$0xff] %v907
    %s927 = scalar_lea.vmem [#allocation1], 32
    %928 = vst [vmem:[%s927] ss:$2 sm:$0xff] %v908
    %v929 = vld.sshfl [vmem:[#allocation1] sm:$0xff pattern:$0x75316420]
    %v930 = vld.sshfl [vmem:[#allocation1 + $0x8] sm:$0xff pattern:$0x75316420]
    %v931 = vld.sshfl [vmem:[#allocation1 + $0x10] sm:$0xff pattern:$0x75316420]
    %v932 = vld.sshfl [vmem:[#allocation1 + $0x18] sm:$0xff pattern:$0x75316420]
    %v933 = vld.sshfl [vmem:[#allocation1 + $0x20] sm:$0xff pattern:$0x75316420]
    %934 = vrot.lane.b32.xlu0 %v929, 113
    %v935 = vpop.permute.xlu0 %934
    %936 = vrot.lane.b32.xlu0 %v930, 113
    %v937 = vpop.permute.xlu0 %936
    %938 = vrot.lane.b32.xlu0 %v931, 113
    %v939 = vpop.permute.xlu0 %938
    %940 = vrot.lane.b32.xlu0 %v932, 113
    %v941 = vpop.permute.xlu0 %940
    %942 = vrot.lane.b32.xlu0 %v933, 113
    %v943 = vpop.permute.xlu0 %942
    %vm944 = vcmask 924672
    %v945 = vsel %vm944, %v935, %v937
    %v946 = vsel %vm944, %v937, %v939
    %v947 = vsel %vm944, %v939, %v941
    %v948 = vsel %vm944, %v941, %v943
    %v953 = vsel %vm917, %v945, 0.0
    %v954 = vsel %vm918, %v946, 0.0
    %v955 = vsel %vm919, %v947, 0.0
    %v956 = vsel %vm920, %v948, 0.0
    %s957 = scalar_lea.vmem %s1, 48
    %v958 = vld [vmem:[%s957] sm:$0xff]
    %v960 = vsel %vm158, %v958, 0
    %v963 = vsel %vm162, %v953, 0
    %v966 = vsel %vm162, %v954, 0
    %v969 = vsel %vm162, %v955, 0
    %v972 = vsel %vm162, %v956, 0
    %974 = vmatpush.msra.mxu0 0.0
    %975 = vmatpush.msra.mxu0 0.0
    %976 = vmatpush.msra.mxu0 0.0
    %977 = vmatpush.msra.mxu0 0.0
    %978 = vmatpush.msra.mxu0 0.0
    %979 = vmatpush.msra.mxu0 0.0
    %980 = vmatpush.msra.mxu0 0.0
    %981 = vmatpush.msra.mxu0 0.0
    %982 = vmatpush.msra.mxu0 0.0
    %983 = vmatpush.msra.mxu0 0.0
    %984 = vmatpush.msra.mxu0 0.0
    %985 = vmatpush.msra.mxu0 0.0
    %986 = vmatpush.msra.mxu0 0.0
    %987 = vmatpush.msra.mxu0 0.0
    %988 = vmatpush.msra.mxu0 0.0
    %989 = vmatpush.msra.mxu0 %v963
    %990 = vmatmul.f32.gmra.mxu0 %v960
    %v991 = vpop.f32.mrf.mxu0
    %v992 = vadd.f32 0.0, %v991
    %993 = vdwg.mxu0
    %994 = vmatpush.msra.mxu0 0.0
    %995 = vmatpush.msra.mxu0 0.0
    %996 = vmatpush.msra.mxu0 0.0
    %997 = vmatpush.msra.mxu0 0.0
    %998 = vmatpush.msra.mxu0 0.0
    %999 = vmatpush.msra.mxu0 0.0
    %1000 = vmatpush.msra.mxu0 0.0
    %1001 = vmatpush.msra.mxu0 0.0
    %1002 = vmatpush.msra.mxu0 0.0
    %1003 = vmatpush.msra.mxu0 0.0
    %1004 = vmatpush.msra.mxu0 0.0
    %1005 = vmatpush.msra.mxu0 0.0
    %1006 = vmatpush.msra.mxu0 0.0
    %1007 = vmatpush.msra.mxu0 0.0
    %1008 = vmatpush.msra.mxu0 0.0
    %1009 = vmatpush.msra.mxu0 %v966
    %1010 = vmatmul.f32.gmra.mxu0 %v960
    %v1011 = vpop.f32.mrf.mxu0
    %v1012 = vadd.f32 0.0, %v1011
    %1013 = vdwg.mxu0
    %1014 = vmatpush.msra.mxu0 0.0
    %1015 = vmatpush.msra.mxu0 0.0
    %1016 = vmatpush.msra.mxu0 0.0
    %1017 = vmatpush.msra.mxu0 0.0
    %1018 = vmatpush.msra.mxu0 0.0
    %1019 = vmatpush.msra.mxu0 0.0
    %1020 = vmatpush.msra.mxu0 0.0
    %1021 = vmatpush.msra.mxu0 0.0
    %1022 = vmatpush.msra.mxu0 0.0
    %1023 = vmatpush.msra.mxu0 0.0
    %1024 = vmatpush.msra.mxu0 0.0
    %1025 = vmatpush.msra.mxu0 0.0
    %1026 = vmatpush.msra.mxu0 0.0
    %1027 = vmatpush.msra.mxu0 0.0
    %1028 = vmatpush.msra.mxu0 0.0
    %1029 = vmatpush.msra.mxu0 %v969
    %1030 = vmatmul.f32.gmra.mxu0 %v960
    %v1031 = vpop.f32.mrf.mxu0
    %v1032 = vadd.f32 0.0, %v1031
    %1033 = vdwg.mxu0
    %1034 = vmatpush.msra.mxu0 0.0
    %1035 = vmatpush.msra.mxu0 0.0
    %1036 = vmatpush.msra.mxu0 0.0
    %1037 = vmatpush.msra.mxu0 0.0
    %1038 = vmatpush.msra.mxu0 0.0
    %1039 = vmatpush.msra.mxu0 0.0
    %1040 = vmatpush.msra.mxu0 0.0
    %1041 = vmatpush.msra.mxu0 0.0
    %1042 = vmatpush.msra.mxu0 0.0
    %1043 = vmatpush.msra.mxu0 0.0
    %1044 = vmatpush.msra.mxu0 0.0
    %1045 = vmatpush.msra.mxu0 0.0
    %1046 = vmatpush.msra.mxu0 0.0
    %1047 = vmatpush.msra.mxu0 0.0
    %1048 = vmatpush.msra.mxu0 0.0
    %1049 = vmatpush.msra.mxu0 %v972
    %1050 = vmatmul.f32.gmra.mxu0 %v960
    %v1051 = vpop.f32.mrf.mxu0
    %v1052 = vadd.f32 0.0, %v1051
    %1053 = vdwg.mxu0
    %v1054 = vadd.f32 %v902, %v992
    %v1055 = vadd.f32 %v903, %v1012
    %v1056 = vadd.f32 %v904, %v1032
    %v1057 = vadd.f32 %v905, %v1052
    %v1058 = vld [vmem:[#allocation2 + $0x4] sm:$0xff]
    %v1059 = vld [vmem:[#allocation2 + $0xc] sm:$0xff]
    %v1060 = vld [vmem:[#allocation2 + $0x14] sm:$0xf]
    %v1061 = vsel %vm38, 1, 0
    %v1062 = vsel %vm39, 1, 0
    %v1063 = vsel %vm40, 1, 0
    %v1064 = vsel %vm41, 1, 0
    %vm1065 = vcmp.eq.s32.totalorder %v1061, 1
    %vm1066 = vcmp.eq.s32.totalorder %v1062, 1
    %vm1067 = vcmp.eq.s32.totalorder %v1063, 1
    %vm1068 = vcmp.eq.s32.totalorder %v1064, 1
    %1072 = vst [vmem:[#allocation1] ss:$2 sm:$0xff] %v1058
    %s1073 = scalar_lea.vmem [#allocation1], 16
    %1074 = vst [vmem:[%s1073] ss:$2 sm:$0xff] %v1059
    %s1075 = scalar_lea.vmem [#allocation1], 32
    %1076 = vst [vmem:[%s1075] ss:$2 sm:$0xff] %v1060
    %v1077 = vld.sshfl [vmem:[#allocation1] sm:$0xff pattern:$0x75316420]
    %v1078 = vld.sshfl [vmem:[#allocation1 + $0x8] sm:$0xff pattern:$0x75316420]
    %v1079 = vld.sshfl [vmem:[#allocation1 + $0x10] sm:$0xff pattern:$0x75316420]
    %v1080 = vld.sshfl [vmem:[#allocation1 + $0x18] sm:$0xff pattern:$0x75316420]
    %v1081 = vld.sshfl [vmem:[#allocation1 + $0x20] sm:$0xff pattern:$0x75316420]
    %1082 = vrot.lane.b32.xlu0 %v1077, 112
    %v1083 = vpop.permute.xlu0 %1082
    %1084 = vrot.lane.b32.xlu0 %v1078, 112
    %v1085 = vpop.permute.xlu0 %1084
    %1086 = vrot.lane.b32.xlu0 %v1079, 112
    %v1087 = vpop.permute.xlu0 %1086
    %1088 = vrot.lane.b32.xlu0 %v1080, 112
    %v1089 = vpop.permute.xlu0 %1088
    %1090 = vrot.lane.b32.xlu0 %v1081, 112
    %v1091 = vpop.permute.xlu0 %1090
    %vm1092 = vcmask 916480
    %v1093 = vsel %vm1092, %v1083, %v1085
    %v1094 = vsel %vm1092, %v1085, %v1087
    %v1095 = vsel %vm1092, %v1087, %v1089
    %v1096 = vsel %vm1092, %v1089, %v1091
    %v1101 = vsel %vm1065, %v1093, 0.0
    %v1102 = vsel %vm1066, %v1094, 0.0
    %v1103 = vsel %vm1067, %v1095, 0.0
    %v1104 = vsel %vm1068, %v1096, 0.0
    %s1105 = scalar_lea.vmem %s1, 56
    %v1106 = vld [vmem:[%s1105] sm:$0xff]
    %v1108 = vsel %vm158, %v1106, 0
    %v1111 = vsel %vm162, %v1101, 0
    %v1114 = vsel %vm162, %v1102, 0
    %v1117 = vsel %vm162, %v1103, 0
    %v1120 = vsel %vm162, %v1104, 0
    %1122 = vmatpush.msra.mxu0 0.0
    %1123 = vmatpush.msra.mxu0 0.0
    %1124 = vmatpush.msra.mxu0 0.0
    %1125 = vmatpush.msra.mxu0 0.0
    %1126 = vmatpush.msra.mxu0 0.0
    %1127 = vmatpush.msra.mxu0 0.0
    %1128 = vmatpush.msra.mxu0 0.0
    %1129 = vmatpush.msra.mxu0 0.0
    %1130 = vmatpush.msra.mxu0 0.0
    %1131 = vmatpush.msra.mxu0 0.0
    %1132 = vmatpush.msra.mxu0 0.0
    %1133 = vmatpush.msra.mxu0 0.0
    %1134 = vmatpush.msra.mxu0 0.0
    %1135 = vmatpush.msra.mxu0 0.0
    %1136 = vmatpush.msra.mxu0 0.0
    %1137 = vmatpush.msra.mxu0 %v1111
    %1138 = vmatmul.f32.gmra.mxu0 %v1108
    %v1139 = vpop.f32.mrf.mxu0
    %v1140 = vadd.f32 0.0, %v1139
    %1141 = vdwg.mxu0
    %1142 = vmatpush.msra.mxu0 0.0
    %1143 = vmatpush.msra.mxu0 0.0
    %1144 = vmatpush.msra.mxu0 0.0
    %1145 = vmatpush.msra.mxu0 0.0
    %1146 = vmatpush.msra.mxu0 0.0
    %1147 = vmatpush.msra.mxu0 0.0
    %1148 = vmatpush.msra.mxu0 0.0
    %1149 = vmatpush.msra.mxu0 0.0
    %1150 = vmatpush.msra.mxu0 0.0
    %1151 = vmatpush.msra.mxu0 0.0
    %1152 = vmatpush.msra.mxu0 0.0
    %1153 = vmatpush.msra.mxu0 0.0
    %1154 = vmatpush.msra.mxu0 0.0
    %1155 = vmatpush.msra.mxu0 0.0
    %1156 = vmatpush.msra.mxu0 0.0
    %1157 = vmatpush.msra.mxu0 %v1114
    %1158 = vmatmul.f32.gmra.mxu0 %v1108
    %v1159 = vpop.f32.mrf.mxu0
    %v1160 = vadd.f32 0.0, %v1159
    %1161 = vdwg.mxu0
    %1162 = vmatpush.msra.mxu0 0.0
    %1163 = vmatpush.msra.mxu0 0.0
    %1164 = vmatpush.msra.mxu0 0.0
    %1165 = vmatpush.msra.mxu0 0.0
    %1166 = vmatpush.msra.mxu0 0.0
    %1167 = vmatpush.msra.mxu0 0.0
    %1168 = vmatpush.msra.mxu0 0.0
    %1169 = vmatpush.msra.mxu0 0.0
    %1170 = vmatpush.msra.mxu0 0.0
    %1171 = vmatpush.msra.mxu0 0.0
    %1172 = vmatpush.msra.mxu0 0.0
    %1173 = vmatpush.msra.mxu0 0.0
    %1174 = vmatpush.msra.mxu0 0.0
    %1175 = vmatpush.msra.mxu0 0.0
    %1176 = vmatpush.msra.mxu0 0.0
    %1177 = vmatpush.msra.mxu0 %v1117
    %1178 = vmatmul.f32.gmra.mxu0 %v1108
    %v1179 = vpop.f32.mrf.mxu0
    %v1180 = vadd.f32 0.0, %v1179
    %1181 = vdwg.mxu0
    %1182 = vmatpush.msra.mxu0 0.0
    %1183 = vmatpush.msra.mxu0 0.0
    %1184 = vmatpush.msra.mxu0 0.0
    %1185 = vmatpush.msra.mxu0 0.0
    %1186 = vmatpush.msra.mxu0 0.0
    %1187 = vmatpush.msra.mxu0 0.0
    %1188 = vmatpush.msra.mxu0 0.0
    %1189 = vmatpush.msra.mxu0 0.0
    %1190 = vmatpush.msra.mxu0 0.0
    %1191 = vmatpush.msra.mxu0 0.0
    %1192 = vmatpush.msra.mxu0 0.0
    %1193 = vmatpush.msra.mxu0 0.0
    %1194 = vmatpush.msra.mxu0 0.0
    %1195 = vmatpush.msra.mxu0 0.0
    %1196 = vmatpush.msra.mxu0 0.0
    %1197 = vmatpush.msra.mxu0 %v1120
    %1198 = vmatmul.f32.gmra.mxu0 %v1108
    %v1199 = vpop.f32.mrf.mxu0
    %v1200 = vadd.f32 0.0, %v1199
    %1201 = vdwg.mxu0
    %v1202 = vadd.f32 %v1054, %v1140
    %v1203 = vadd.f32 %v1055, %v1160
    %v1204 = vadd.f32 %v1056, %v1180
    %v1205 = vadd.f32 %v1057, %v1200
    %v1206 = vld [vmem:[#allocation2 + $0x4] sm:$0xff]
    %v1207 = vld [vmem:[#allocation2 + $0xc] sm:$0xff]
    %v1208 = vld [vmem:[#allocation2 + $0x14] sm:$0xf]
    %vm1209 = vmand %vm38, %vm46
    %vm1210 = vmand %vm39, %vm47
    %vm1211 = vmand %vm40, %vm48
    %vm1212 = vmand %vm41, %vm49
    %v1213 = vsel %vm1209, 1, 0
    %v1214 = vsel %vm1210, 1, 0
    %v1215 = vsel %vm1211, 1, 0
    %v1216 = vsel %vm1212, 1, 0
    %vm1217 = vcmp.eq.s32.totalorder %v1213, 1
    %vm1218 = vcmp.eq.s32.totalorder %v1214, 1
    %vm1219 = vcmp.eq.s32.totalorder %v1215, 1
    %vm1220 = vcmp.eq.s32.totalorder %v1216, 1
    %1224 = vst [vmem:[#allocation1] ss:$2 sm:$0xff] %v1206
    %s1225 = scalar_lea.vmem [#allocation1], 16
    %1226 = vst [vmem:[%s1225] ss:$2 sm:$0xff] %v1207
    %s1227 = scalar_lea.vmem [#allocation1], 32
    %1228 = vst [vmem:[%s1227] ss:$2 sm:$0xff] %v1208
    %v1229 = vld.sshfl [vmem:[#allocation1] sm:$0xff pattern:$0x75316420]
    %v1230 = vld.sshfl [vmem:[#allocation1 + $0x8] sm:$0xff pattern:$0x75316420]
    %v1231 = vld.sshfl [vmem:[#allocation1 + $0x10] sm:$0xff pattern:$0x75316420]
    %v1232 = vld.sshfl [vmem:[#allocation1 + $0x18] sm:$0xff pattern:$0x75316420]
    %v1233 = vld.sshfl [vmem:[#allocation1 + $0x20] sm:$0xff pattern:$0x75316420]
    %1234 = vrot.lane.b32.xlu0 %v1229, 111
    %v1235 = vpop.permute.xlu0 %1234
    %1236 = vrot.lane.b32.xlu0 %v1230, 111
    %v1237 = vpop.permute.xlu0 %1236
    %1238 = vrot.lane.b32.xlu0 %v1231, 111
    %v1239 = vpop.permute.xlu0 %1238
    %1240 = vrot.lane.b32.xlu0 %v1232, 111
    %v1241 = vpop.permute.xlu0 %1240
    %1242 = vrot.lane.b32.xlu0 %v1233, 111
    %v1243 = vpop.permute.xlu0 %1242
    %vm1244 = vcmask 908288
    %v1245 = vsel %vm1244, %v1235, %v1237
    %v1246 = vsel %vm1244, %v1237, %v1239
    %v1247 = vsel %vm1244, %v1239, %v1241
    %v1248 = vsel %vm1244, %v1241, %v1243
    %v1253 = vsel %vm1217, %v1245, 0.0
    %v1254 = vsel %vm1218, %v1246, 0.0
    %v1255 = vsel %vm1219, %v1247, 0.0
    %v1256 = vsel %vm1220, %v1248, 0.0
    %s1257 = scalar_lea.vmem %s1, 64
    %v1258 = vld [vmem:[%s1257] sm:$0xff]
    %v1260 = vsel %vm158, %v1258, 0
    %v1263 = vsel %vm162, %v1253, 0
    %v1266 = vsel %vm162, %v1254, 0
    %v1269 = vsel %vm162, %v1255, 0
    %v1272 = vsel %vm162, %v1256, 0
    %1274 = vmatpush.msra.mxu0 0.0
    %1275 = vmatpush.msra.mxu0 0.0
    %1276 = vmatpush.msra.mxu0 0.0
    %1277 = vmatpush.msra.mxu0 0.0
    %1278 = vmatpush.msra.mxu0 0.0
    %1279 = vmatpush.msra.mxu0 0.0
    %1280 = vmatpush.msra.mxu0 0.0
    %1281 = vmatpush.msra.mxu0 0.0
    %1282 = vmatpush.msra.mxu0 0.0
    %1283 = vmatpush.msra.mxu0 0.0
    %1284 = vmatpush.msra.mxu0 0.0
    %1285 = vmatpush.msra.mxu0 0.0
    %1286 = vmatpush.msra.mxu0 0.0
    %1287 = vmatpush.msra.mxu0 0.0
    %1288 = vmatpush.msra.mxu0 0.0
    %1289 = vmatpush.msra.mxu0 %v1263
    %1290 = vmatmul.f32.gmra.mxu0 %v1260
    %v1291 = vpop.f32.mrf.mxu0
    %v1292 = vadd.f32 0.0, %v1291
    %1293 = vdwg.mxu0
    %1294 = vmatpush.msra.mxu0 0.0
    %1295 = vmatpush.msra.mxu0 0.0
    %1296 = vmatpush.msra.mxu0 0.0
    %1297 = vmatpush.msra.mxu0 0.0
    %1298 = vmatpush.msra.mxu0 0.0
    %1299 = vmatpush.msra.mxu0 0.0
    %1300 = vmatpush.msra.mxu0 0.0
    %1301 = vmatpush.msra.mxu0 0.0
    %1302 = vmatpush.msra.mxu0 0.0
    %1303 = vmatpush.msra.mxu0 0.0
    %1304 = vmatpush.msra.mxu0 0.0
    %1305 = vmatpush.msra.mxu0 0.0
    %1306 = vmatpush.msra.mxu0 0.0
    %1307 = vmatpush.msra.mxu0 0.0
    %1308 = vmatpush.msra.mxu0 0.0
    %1309 = vmatpush.msra.mxu0 %v1266
    %1310 = vmatmul.f32.gmra.mxu0 %v1260
    %v1311 = vpop.f32.mrf.mxu0
    %v1312 = vadd.f32 0.0, %v1311
    %1313 = vdwg.mxu0
    %1314 = vmatpush.msra.mxu0 0.0
    %1315 = vmatpush.msra.mxu0 0.0
    %1316 = vmatpush.msra.mxu0 0.0
    %1317 = vmatpush.msra.mxu0 0.0
    %1318 = vmatpush.msra.mxu0 0.0
    %1319 = vmatpush.msra.mxu0 0.0
    %1320 = vmatpush.msra.mxu0 0.0
    %1321 = vmatpush.msra.mxu0 0.0
    %1322 = vmatpush.msra.mxu0 0.0
    %1323 = vmatpush.msra.mxu0 0.0
    %1324 = vmatpush.msra.mxu0 0.0
    %1325 = vmatpush.msra.mxu0 0.0
    %1326 = vmatpush.msra.mxu0 0.0
    %1327 = vmatpush.msra.mxu0 0.0
    %1328 = vmatpush.msra.mxu0 0.0
    %1329 = vmatpush.msra.mxu0 %v1269
    %1330 = vmatmul.f32.gmra.mxu0 %v1260
    %v1331 = vpop.f32.mrf.mxu0
    %v1332 = vadd.f32 0.0, %v1331
    %1333 = vdwg.mxu0
    %1334 = vmatpush.msra.mxu0 0.0
    %1335 = vmatpush.msra.mxu0 0.0
    %1336 = vmatpush.msra.mxu0 0.0
    %1337 = vmatpush.msra.mxu0 0.0
    %1338 = vmatpush.msra.mxu0 0.0
    %1339 = vmatpush.msra.mxu0 0.0
    %1340 = vmatpush.msra.mxu0 0.0
    %1341 = vmatpush.msra.mxu0 0.0
    %1342 = vmatpush.msra.mxu0 0.0
    %1343 = vmatpush.msra.mxu0 0.0
    %1344 = vmatpush.msra.mxu0 0.0
    %1345 = vmatpush.msra.mxu0 0.0
    %1346 = vmatpush.msra.mxu0 0.0
    %1347 = vmatpush.msra.mxu0 0.0
    %1348 = vmatpush.msra.mxu0 0.0
    %1349 = vmatpush.msra.mxu0 %v1272
    %1350 = vmatmul.f32.gmra.mxu0 %v1260
    %v1351 = vpop.f32.mrf.mxu0
    %v1352 = vadd.f32 0.0, %v1351
    %1353 = vdwg.mxu0
    %v1354 = vadd.f32 %v1202, %v1292
    %v1355 = vadd.f32 %v1203, %v1312
    %v1356 = vadd.f32 %v1204, %v1332
    %v1357 = vadd.f32 %v1205, %v1352
    %v1358 = vld [vmem:[%s2] sm:$0xff]
    %1360 = vset.pattern.permute.xlu0 0
    %1361 = vperm.xlu0 %1360, %v1358
    %v1362 = vpop.permute.xlu0 %1361
    %v1364 = vadd.f32 %v1354, %v1362
    %v1365 = vadd.f32 %v1355, %v1362
    %v1366 = vadd.f32 %v1356, %v1362
    %v1367 = vadd.f32 %v1357, %v1362
    %v1368 = vmax.f32 %v1364, 0.0
    %v1369 = vmax.f32 %v1365, 0.0
    %v1370 = vmax.f32 %v1366, 0.0
    %v1371 = vmax.f32 %v1367, 0.0
    %1372 = vst [vmem:[#allocation3] sm:$0xff] 0.0
    %1373 = vst [vmem:[#allocation3 + $0x28] sm:$0xff] 0.0
    %1374 = vst [vmem:[#allocation3 + $0x8] sm:$0xff] %v1368
    %1375 = vst [vmem:[#allocation3 + $0x10] sm:$0xff] %v1369
    %1376 = vst [vmem:[#allocation3 + $0x18] sm:$0xff] %v1370
    %1377 = vst [vmem:[#allocation3 + $0x20] sm:$0xff] %v1371
    %v1378 = vld [vmem:[#allocation3] sm:$0xff]
    %v1379 = vld [vmem:[#allocation3 + $0x8] sm:$0xff]
    %v1380 = vld [vmem:[#allocation3 + $0x10] sm:$0xff]
    %v1381 = vld [vmem:[#allocation3 + $0x18] sm:$0xff]
    %v1382 = vld [vmem:[#allocation3 + $0x20] sm:$0xff]
    %1388 = vrot.lane.b32.xlu0 %v1378, 17
    %v1389 = vpop.permute.xlu0 %1388
    %1390 = vrot.lane.b32.xlu0 %v1379, 17
    %v1391 = vpop.permute.xlu0 %1390
    %1392 = vrot.lane.b32.xlu0 %v1380, 17
    %v1393 = vpop.permute.xlu0 %1392
    %1394 = vrot.lane.b32.xlu0 %v1381, 17
    %v1395 = vpop.permute.xlu0 %1394
    %1396 = vrot.lane.b32.xlu0 %v1382, 17
    %v1397 = vpop.permute.xlu0 %1396
    %v1398 = vsel %vm95, %v1389, %v1391
    %v1399 = vsel %vm95, %v1391, %v1393
    %v1400 = vsel %vm95, %v1393, %v1395
    %v1401 = vsel %vm95, %v1395, %v1397
    %v1406 = vsel %vm68, %v1398, 0.0
    %v1407 = vsel %vm69, %v1399, 0.0
    %v1408 = vsel %vm70, %v1400, 0.0
    %v1409 = vsel %vm71, %v1401, 0.0
    %v1410 = vld [vmem:[%s3] sm:$0xff]
    %1411 = vrot.lane.b32.xlu0 %v1378, 16
    %v1412 = vpop.permute.xlu0 %1411
    %1413 = vrot.lane.b32.xlu0 %v1379, 16
    %v1414 = vpop.permute.xlu0 %1413
    %1415 = vrot.lane.b32.xlu0 %v1380, 16
    %v1416 = vpop.permute.xlu0 %1415
    %1417 = vrot.lane.b32.xlu0 %v1381, 16
    %v1418 = vpop.permute.xlu0 %1417
    %1419 = vrot.lane.b32.xlu0 %v1382, 16
    %v1420 = vpop.permute.xlu0 %1419
    %v1421 = vsel %vm143, %v1412, %v1414
    %v1422 = vsel %vm143, %v1414, %v1416
    %v1423 = vsel %vm143, %v1416, %v1418
    %v1424 = vsel %vm143, %v1418, %v1420
    %v1429 = vsel %vm116, %v1421, 0.0
    %v1430 = vsel %vm117, %v1422, 0.0
    %v1431 = vsel %vm118, %v1423, 0.0
    %v1432 = vsel %vm119, %v1424, 0.0
    %s1433 = scalar_lea.vmem %s3, 8
    %v1434 = vld [vmem:[%s1433] sm:$0xff]
    %vm1435 = vcmask 64512
    %v1437 = vsel %vm1435, %v1434, 0
    %1439 = vmatpush.msra.mxu0 0.0
    %1440 = vmatpush.msra.mxu0 0.0
    %1441 = vmatpush.msra.mxu0 0.0
    %1442 = vmatpush.msra.mxu0 0.0
    %1443 = vmatpush.msra.mxu0 0.0
    %1444 = vmatpush.msra.mxu0 0.0
    %1445 = vmatpush.msra.mxu0 0.0
    %1446 = vmatpush.msra.mxu0 0.0
    %1447 = vmatpush.msra.mxu0 0.0
    %1448 = vmatpush.msra.mxu0 0.0
    %1449 = vmatpush.msra.mxu0 0.0
    %1450 = vmatpush.msra.mxu0 0.0
    %1451 = vmatpush.msra.mxu0 0.0
    %1452 = vmatpush.msra.mxu0 0.0
    %1453 = vmatpush.msra.mxu0 0.0
    %1454 = vmatpush.msra.mxu0 %v1429
    %1455 = vmatmul.f32.gmra.mxu0 %v1437
    %v1456 = vpop.f32.mrf.mxu0
    %v1457 = vadd.f32 0.0, %v1456
    %1458 = vdwg.mxu0
    %1459 = vmatpush.msra.mxu0 0.0
    %1460 = vmatpush.msra.mxu0 0.0
    %1461 = vmatpush.msra.mxu0 0.0
    %1462 = vmatpush.msra.mxu0 0.0
    %1463 = vmatpush.msra.mxu0 0.0
    %1464 = vmatpush.msra.mxu0 0.0
    %1465 = vmatpush.msra.mxu0 0.0
    %1466 = vmatpush.msra.mxu0 0.0
    %1467 = vmatpush.msra.mxu0 0.0
    %1468 = vmatpush.msra.mxu0 0.0
    %1469 = vmatpush.msra.mxu0 0.0
    %1470 = vmatpush.msra.mxu0 0.0
    %1471 = vmatpush.msra.mxu0 0.0
    %1472 = vmatpush.msra.mxu0 0.0
    %1473 = vmatpush.msra.mxu0 0.0
    %1474 = vmatpush.msra.mxu0 %v1430
    %1475 = vmatmul.f32.gmra.mxu0 %v1437
    %v1476 = vpop.f32.mrf.mxu0
    %v1477 = vadd.f32 0.0, %v1476
    %1478 = vdwg.mxu0
    %1479 = vmatpush.msra.mxu0 0.0
    %1480 = vmatpush.msra.mxu0 0.0
    %1481 = vmatpush.msra.mxu0 0.0
    %1482 = vmatpush.msra.mxu0 0.0
    %1483 = vmatpush.msra.mxu0 0.0
    %1484 = vmatpush.msra.mxu0 0.0
    %1485 = vmatpush.msra.mxu0 0.0
    %1486 = vmatpush.msra.mxu0 0.0
    %1487 = vmatpush.msra.mxu0 0.0
    %1488 = vmatpush.msra.mxu0 0.0
    %1489 = vmatpush.msra.mxu0 0.0
    %1490 = vmatpush.msra.mxu0 0.0
    %1491 = vmatpush.msra.mxu0 0.0
    %1492 = vmatpush.msra.mxu0 0.0
    %1493 = vmatpush.msra.mxu0 0.0
    %1494 = vmatpush.msra.mxu0 %v1431
    %1495 = vmatmul.f32.gmra.mxu0 %v1437
    %v1496 = vpop.f32.mrf.mxu0
    %v1497 = vadd.f32 0.0, %v1496
    %1498 = vdwg.mxu0
    %1499 = vmatpush.msra.mxu0 0.0
    %1500 = vmatpush.msra.mxu0 0.0
    %1501 = vmatpush.msra.mxu0 0.0
    %1502 = vmatpush.msra.mxu0 0.0
    %1503 = vmatpush.msra.mxu0 0.0
    %1504 = vmatpush.msra.mxu0 0.0
    %1505 = vmatpush.msra.mxu0 0.0
    %1506 = vmatpush.msra.mxu0 0.0
    %1507 = vmatpush.msra.mxu0 0.0
    %1508 = vmatpush.msra.mxu0 0.0
    %1509 = vmatpush.msra.mxu0 0.0
    %1510 = vmatpush.msra.mxu0 0.0
    %1511 = vmatpush.msra.mxu0 0.0
    %1512 = vmatpush.msra.mxu0 0.0
    %1513 = vmatpush.msra.mxu0 0.0
    %1514 = vmatpush.msra.mxu0 %v1432
    %1515 = vmatmul.f32.gmra.mxu0 %v1437
    %v1516 = vpop.f32.mrf.mxu0
    %v1517 = vadd.f32 0.0, %v1516
    %1518 = vdwg.mxu0
    %v1520 = vsel %vm1435, %v1410, 0
    %1522 = vmatpush.msra.mxu0 0.0
    %1523 = vmatpush.msra.mxu0 0.0
    %1524 = vmatpush.msra.mxu0 0.0
    %1525 = vmatpush.msra.mxu0 0.0
    %1526 = vmatpush.msra.mxu0 0.0
    %1527 = vmatpush.msra.mxu0 0.0
    %1528 = vmatpush.msra.mxu0 0.0
    %1529 = vmatpush.msra.mxu0 0.0
    %1530 = vmatpush.msra.mxu0 0.0
    %1531 = vmatpush.msra.mxu0 0.0
    %1532 = vmatpush.msra.mxu0 0.0
    %1533 = vmatpush.msra.mxu0 0.0
    %1534 = vmatpush.msra.mxu0 0.0
    %1535 = vmatpush.msra.mxu0 0.0
    %1536 = vmatpush.msra.mxu0 0.0
    %1537 = vmatpush.msra.mxu0 %v1406
    %1538 = vmatmul.f32.gmra.mxu0 %v1520
    %v1539 = vpop.f32.mrf.mxu0
    %v1540 = vadd.f32 %v1457, %v1539
    %1541 = vdwg.mxu0
    %1542 = vmatpush.msra.mxu0 0.0
    %1543 = vmatpush.msra.mxu0 0.0
    %1544 = vmatpush.msra.mxu0 0.0
    %1545 = vmatpush.msra.mxu0 0.0
    %1546 = vmatpush.msra.mxu0 0.0
    %1547 = vmatpush.msra.mxu0 0.0
    %1548 = vmatpush.msra.mxu0 0.0
    %1549 = vmatpush.msra.mxu0 0.0
    %1550 = vmatpush.msra.mxu0 0.0
    %1551 = vmatpush.msra.mxu0 0.0
    %1552 = vmatpush.msra.mxu0 0.0
    %1553 = vmatpush.msra.mxu0 0.0
    %1554 = vmatpush.msra.mxu0 0.0
    %1555 = vmatpush.msra.mxu0 0.0
    %1556 = vmatpush.msra.mxu0 0.0
    %1557 = vmatpush.msra.mxu0 %v1407
    %1558 = vmatmul.f32.gmra.mxu0 %v1520
    %v1559 = vpop.f32.mrf.mxu0
    %v1560 = vadd.f32 %v1477, %v1559
    %1561 = vdwg.mxu0
    %1562 = vmatpush.msra.mxu0 0.0
    %1563 = vmatpush.msra.mxu0 0.0
    %1564 = vmatpush.msra.mxu0 0.0
    %1565 = vmatpush.msra.mxu0 0.0
    %1566 = vmatpush.msra.mxu0 0.0
    %1567 = vmatpush.msra.mxu0 0.0
    %1568 = vmatpush.msra.mxu0 0.0
    %1569 = vmatpush.msra.mxu0 0.0
    %1570 = vmatpush.msra.mxu0 0.0
    %1571 = vmatpush.msra.mxu0 0.0
    %1572 = vmatpush.msra.mxu0 0.0
    %1573 = vmatpush.msra.mxu0 0.0
    %1574 = vmatpush.msra.mxu0 0.0
    %1575 = vmatpush.msra.mxu0 0.0
    %1576 = vmatpush.msra.mxu0 0.0
    %1577 = vmatpush.msra.mxu0 %v1408
    %1578 = vmatmul.f32.gmra.mxu0 %v1520
    %v1579 = vpop.f32.mrf.mxu0
    %v1580 = vadd.f32 %v1497, %v1579
    %1581 = vdwg.mxu0
    %1582 = vmatpush.msra.mxu0 0.0
    %1583 = vmatpush.msra.mxu0 0.0
    %1584 = vmatpush.msra.mxu0 0.0
    %1585 = vmatpush.msra.mxu0 0.0
    %1586 = vmatpush.msra.mxu0 0.0
    %1587 = vmatpush.msra.mxu0 0.0
    %1588 = vmatpush.msra.mxu0 0.0
    %1589 = vmatpush.msra.mxu0 0.0
    %1590 = vmatpush.msra.mxu0 0.0
    %1591 = vmatpush.msra.mxu0 0.0
    %1592 = vmatpush.msra.mxu0 0.0
    %1593 = vmatpush.msra.mxu0 0.0
    %1594 = vmatpush.msra.mxu0 0.0
    %1595 = vmatpush.msra.mxu0 0.0
    %1596 = vmatpush.msra.mxu0 0.0
    %1597 = vmatpush.msra.mxu0 %v1409
    %1598 = vmatmul.f32.gmra.mxu0 %v1520
    %v1599 = vpop.f32.mrf.mxu0
    %v1600 = vadd.f32 %v1517, %v1599
    %1601 = vdwg.mxu0
    %1602 = vrot.lane.b32.xlu0 %v1378, 15
    %v1603 = vpop.permute.xlu0 %1602
    %1604 = vrot.lane.b32.xlu0 %v1379, 15
    %v1605 = vpop.permute.xlu0 %1604
    %1606 = vrot.lane.b32.xlu0 %v1380, 15
    %v1607 = vpop.permute.xlu0 %1606
    %1608 = vrot.lane.b32.xlu0 %v1381, 15
    %v1609 = vpop.permute.xlu0 %1608
    %1610 = vrot.lane.b32.xlu0 %v1382, 15
    %v1611 = vpop.permute.xlu0 %1610
    %v1612 = vsel %vm388, %v1603, %v1605
    %v1613 = vsel %vm388, %v1605, %v1607
    %v1614 = vsel %vm388, %v1607, %v1609
    %v1615 = vsel %vm388, %v1609, %v1611
    %v1620 = vsel %vm361, %v1612, 0.0
    %v1621 = vsel %vm362, %v1613, 0.0
    %v1622 = vsel %vm363, %v1614, 0.0
    %v1623 = vsel %vm364, %v1615, 0.0
    %s1624 = scalar_lea.vmem %s3, 16
    %v1625 = vld [vmem:[%s1624] sm:$0xff]
    %v1627 = vsel %vm1435, %v1625, 0
    %1629 = vmatpush.msra.mxu0 0.0
    %1630 = vmatpush.msra.mxu0 0.0
    %1631 = vmatpush.msra.mxu0 0.0
    %1632 = vmatpush.msra.mxu0 0.0
    %1633 = vmatpush.msra.mxu0 0.0
    %1634 = vmatpush.msra.mxu0 0.0
    %1635 = vmatpush.msra.mxu0 0.0
    %1636 = vmatpush.msra.mxu0 0.0
    %1637 = vmatpush.msra.mxu0 0.0
    %1638 = vmatpush.msra.mxu0 0.0
    %1639 = vmatpush.msra.mxu0 0.0
    %1640 = vmatpush.msra.mxu0 0.0
    %1641 = vmatpush.msra.mxu0 0.0
    %1642 = vmatpush.msra.mxu0 0.0
    %1643 = vmatpush.msra.mxu0 0.0
    %1644 = vmatpush.msra.mxu0 %v1620
    %1645 = vmatmul.f32.gmra.mxu0 %v1627
    %v1646 = vpop.f32.mrf.mxu0
    %v1647 = vadd.f32 0.0, %v1646
    %1648 = vdwg.mxu0
    %1649 = vmatpush.msra.mxu0 0.0
    %1650 = vmatpush.msra.mxu0 0.0
    %1651 = vmatpush.msra.mxu0 0.0
    %1652 = vmatpush.msra.mxu0 0.0
    %1653 = vmatpush.msra.mxu0 0.0
    %1654 = vmatpush.msra.mxu0 0.0
    %1655 = vmatpush.msra.mxu0 0.0
    %1656 = vmatpush.msra.mxu0 0.0
    %1657 = vmatpush.msra.mxu0 0.0
    %1658 = vmatpush.msra.mxu0 0.0
    %1659 = vmatpush.msra.mxu0 0.0
    %1660 = vmatpush.msra.mxu0 0.0
    %1661 = vmatpush.msra.mxu0 0.0
    %1662 = vmatpush.msra.mxu0 0.0
    %1663 = vmatpush.msra.mxu0 0.0
    %1664 = vmatpush.msra.mxu0 %v1621
    %1665 = vmatmul.f32.gmra.mxu0 %v1627
    %v1666 = vpop.f32.mrf.mxu0
    %v1667 = vadd.f32 0.0, %v1666
    %1668 = vdwg.mxu0
    %1669 = vmatpush.msra.mxu0 0.0
    %1670 = vmatpush.msra.mxu0 0.0
    %1671 = vmatpush.msra.mxu0 0.0
    %1672 = vmatpush.msra.mxu0 0.0
    %1673 = vmatpush.msra.mxu0 0.0
    %1674 = vmatpush.msra.mxu0 0.0
    %1675 = vmatpush.msra.mxu0 0.0
    %1676 = vmatpush.msra.mxu0 0.0
    %1677 = vmatpush.msra.mxu0 0.0
    %1678 = vmatpush.msra.mxu0 0.0
    %1679 = vmatpush.msra.mxu0 0.0
    %1680 = vmatpush.msra.mxu0 0.0
    %1681 = vmatpush.msra.mxu0 0.0
    %1682 = vmatpush.msra.mxu0 0.0
    %1683 = vmatpush.msra.mxu0 0.0
    %1684 = vmatpush.msra.mxu0 %v1622
    %1685 = vmatmul.f32.gmra.mxu0 %v1627
    %v1686 = vpop.f32.mrf.mxu0
    %v1687 = vadd.f32 0.0, %v1686
    %1688 = vdwg.mxu0
    %1689 = vmatpush.msra.mxu0 0.0
    %1690 = vmatpush.msra.mxu0 0.0
    %1691 = vmatpush.msra.mxu0 0.0
    %1692 = vmatpush.msra.mxu0 0.0
    %1693 = vmatpush.msra.mxu0 0.0
    %1694 = vmatpush.msra.mxu0 0.0
    %1695 = vmatpush.msra.mxu0 0.0
    %1696 = vmatpush.msra.mxu0 0.0
    %1697 = vmatpush.msra.mxu0 0.0
    %1698 = vmatpush.msra.mxu0 0.0
    %1699 = vmatpush.msra.mxu0 0.0
    %1700 = vmatpush.msra.mxu0 0.0
    %1701 = vmatpush.msra.mxu0 0.0
    %1702 = vmatpush.msra.mxu0 0.0
    %1703 = vmatpush.msra.mxu0 0.0
    %1704 = vmatpush.msra.mxu0 %v1623
    %1705 = vmatmul.f32.gmra.mxu0 %v1627
    %v1706 = vpop.f32.mrf.mxu0
    %v1707 = vadd.f32 0.0, %v1706
    %1708 = vdwg.mxu0
    %v1709 = vadd.f32 %v1540, %v1647
    %v1710 = vadd.f32 %v1560, %v1667
    %v1711 = vadd.f32 %v1580, %v1687
    %v1712 = vadd.f32 %v1600, %v1707
    %1713 = vrot.lane.b32.xlu0 %v1378, 1
    %v1714 = vpop.permute.xlu0 %1713
    %1715 = vrot.lane.b32.xlu0 %v1379, 1
    %v1716 = vpop.permute.xlu0 %1715
    %1717 = vrot.lane.b32.xlu0 %v1380, 1
    %v1718 = vpop.permute.xlu0 %1717
    %1719 = vrot.lane.b32.xlu0 %v1381, 1
    %v1720 = vpop.permute.xlu0 %1719
    %1721 = vrot.lane.b32.xlu0 %v1382, 1
    %v1722 = vpop.permute.xlu0 %1721
    %v1723 = vsel %vm536, %v1714, %v1716
    %v1724 = vsel %vm536, %v1716, %v1718
    %v1725 = vsel %vm536, %v1718, %v1720
    %v1726 = vsel %vm536, %v1720, %v1722
    %v1731 = vsel %vm509, %v1723, 0.0
    %v1732 = vsel %vm510, %v1724, 0.0
    %v1733 = vsel %vm511, %v1725, 0.0
    %v1734 = vsel %vm512, %v1726, 0.0
    %s1735 = scalar_lea.vmem %s3, 24
    %v1736 = vld [vmem:[%s1735] sm:$0xff]
    %v1738 = vsel %vm1435, %v1736, 0
    %1740 = vmatpush.msra.mxu0 0.0
    %1741 = vmatpush.msra.mxu0 0.0
    %1742 = vmatpush.msra.mxu0 0.0
    %1743 = vmatpush.msra.mxu0 0.0
    %1744 = vmatpush.msra.mxu0 0.0
    %1745 = vmatpush.msra.mxu0 0.0
    %1746 = vmatpush.msra.mxu0 0.0
    %1747 = vmatpush.msra.mxu0 0.0
    %1748 = vmatpush.msra.mxu0 0.0
    %1749 = vmatpush.msra.mxu0 0.0
    %1750 = vmatpush.msra.mxu0 0.0
    %1751 = vmatpush.msra.mxu0 0.0
    %1752 = vmatpush.msra.mxu0 0.0
    %1753 = vmatpush.msra.mxu0 0.0
    %1754 = vmatpush.msra.mxu0 0.0
    %1755 = vmatpush.msra.mxu0 %v1731
    %1756 = vmatmul.f32.gmra.mxu0 %v1738
    %v1757 = vpop.f32.mrf.mxu0
    %v1758 = vadd.f32 0.0, %v1757
    %1759 = vdwg.mxu0
    %1760 = vmatpush.msra.mxu0 0.0
    %1761 = vmatpush.msra.mxu0 0.0
    %1762 = vmatpush.msra.mxu0 0.0
    %1763 = vmatpush.msra.mxu0 0.0
    %1764 = vmatpush.msra.mxu0 0.0
    %1765 = vmatpush.msra.mxu0 0.0
    %1766 = vmatpush.msra.mxu0 0.0
    %1767 = vmatpush.msra.mxu0 0.0
    %1768 = vmatpush.msra.mxu0 0.0
    %1769 = vmatpush.msra.mxu0 0.0
    %1770 = vmatpush.msra.mxu0 0.0
    %1771 = vmatpush.msra.mxu0 0.0
    %1772 = vmatpush.msra.mxu0 0.0
    %1773 = vmatpush.msra.mxu0 0.0
    %1774 = vmatpush.msra.mxu0 0.0
    %1775 = vmatpush.msra.mxu0 %v1732
    %1776 = vmatmul.f32.gmra.mxu0 %v1738
    %v1777 = vpop.f32.mrf.mxu0
    %v1778 = vadd.f32 0.0, %v1777
    %1779 = vdwg.mxu0
    %1780 = vmatpush.msra.mxu0 0.0
    %1781 = vmatpush.msra.mxu0 0.0
    %1782 = vmatpush.msra.mxu0 0.0
    %1783 = vmatpush.msra.mxu0 0.0
    %1784 = vmatpush.msra.mxu0 0.0
    %1785 = vmatpush.msra.mxu0 0.0
    %1786 = vmatpush.msra.mxu0 0.0
    %1787 = vmatpush.msra.mxu0 0.0
    %1788 = vmatpush.msra.mxu0 0.0
    %1789 = vmatpush.msra.mxu0 0.0
    %1790 = vmatpush.msra.mxu0 0.0
    %1791 = vmatpush.msra.mxu0 0.0
    %1792 = vmatpush.msra.mxu0 0.0
    %1793 = vmatpush.msra.mxu0 0.0
    %1794 = vmatpush.msra.mxu0 0.0
    %1795 = vmatpush.msra.mxu0 %v1733
    %1796 = vmatmul.f32.gmra.mxu0 %v1738
    %v1797 = vpop.f32.mrf.mxu0
    %v1798 = vadd.f32 0.0, %v1797
    %1799 = vdwg.mxu0
    %1800 = vmatpush.msra.mxu0 0.0
    %1801 = vmatpush.msra.mxu0 0.0
    %1802 = vmatpush.msra.mxu0 0.0
    %1803 = vmatpush.msra.mxu0 0.0
    %1804 = vmatpush.msra.mxu0 0.0
    %1805 = vmatpush.msra.mxu0 0.0
    %1806 = vmatpush.msra.mxu0 0.0
    %1807 = vmatpush.msra.mxu0 0.0
    %1808 = vmatpush.msra.mxu0 0.0
    %1809 = vmatpush.msra.mxu0 0.0
    %1810 = vmatpush.msra.mxu0 0.0
    %1811 = vmatpush.msra.mxu0 0.0
    %1812 = vmatpush.msra.mxu0 0.0
    %1813 = vmatpush.msra.mxu0 0.0
    %1814 = vmatpush.msra.mxu0 0.0
    %1815 = vmatpush.msra.mxu0 %v1734
    %1816 = vmatmul.f32.gmra.mxu0 %v1738
    %v1817 = vpop.f32.mrf.mxu0
    %v1818 = vadd.f32 0.0, %v1817
    %1819 = vdwg.mxu0
    %v1820 = vadd.f32 %v1709, %v1758
    %v1821 = vadd.f32 %v1710, %v1778
    %v1822 = vadd.f32 %v1711, %v1798
    %v1823 = vadd.f32 %v1712, %v1818
    %s1824 = scalar_lea.vmem %s3, 32
    %v1825 = vld [vmem:[%s1824] sm:$0xff]
    %v1827 = vsel %vm1435, %v1825, 0
    %1829 = vmatpush.msra.mxu0 0.0
    %1830 = vmatpush.msra.mxu0 0.0
    %1831 = vmatpush.msra.mxu0 0.0
    %1832 = vmatpush.msra.mxu0 0.0
    %1833 = vmatpush.msra.mxu0 0.0
    %1834 = vmatpush.msra.mxu0 0.0
    %1835 = vmatpush.msra.mxu0 0.0
    %1836 = vmatpush.msra.mxu0 0.0
    %1837 = vmatpush.msra.mxu0 0.0
    %1838 = vmatpush.msra.mxu0 0.0
    %1839 = vmatpush.msra.mxu0 0.0
    %1840 = vmatpush.msra.mxu0 0.0
    %1841 = vmatpush.msra.mxu0 0.0
    %1842 = vmatpush.msra.mxu0 0.0
    %1843 = vmatpush.msra.mxu0 0.0
    %1844 = vmatpush.msra.mxu0 %v1379
    %1845 = vmatmul.f32.gmra.mxu0 %v1827
    %v1846 = vpop.f32.mrf.mxu0
    %v1847 = vadd.f32 0.0, %v1846
    %1848 = vdwg.mxu0
    %1849 = vmatpush.msra.mxu0 0.0
    %1850 = vmatpush.msra.mxu0 0.0
    %1851 = vmatpush.msra.mxu0 0.0
    %1852 = vmatpush.msra.mxu0 0.0
    %1853 = vmatpush.msra.mxu0 0.0
    %1854 = vmatpush.msra.mxu0 0.0
    %1855 = vmatpush.msra.mxu0 0.0
    %1856 = vmatpush.msra.mxu0 0.0
    %1857 = vmatpush.msra.mxu0 0.0
    %1858 = vmatpush.msra.mxu0 0.0
    %1859 = vmatpush.msra.mxu0 0.0
    %1860 = vmatpush.msra.mxu0 0.0
    %1861 = vmatpush.msra.mxu0 0.0
    %1862 = vmatpush.msra.mxu0 0.0
    %1863 = vmatpush.msra.mxu0 0.0
    %1864 = vmatpush.msra.mxu0 %v1380
    %1865 = vmatmul.f32.gmra.mxu0 %v1827
    %v1866 = vpop.f32.mrf.mxu0
    %v1867 = vadd.f32 0.0, %v1866
    %1868 = vdwg.mxu0
    %1869 = vmatpush.msra.mxu0 0.0
    %1870 = vmatpush.msra.mxu0 0.0
    %1871 = vmatpush.msra.mxu0 0.0
    %1872 = vmatpush.msra.mxu0 0.0
    %1873 = vmatpush.msra.mxu0 0.0
    %1874 = vmatpush.msra.mxu0 0.0
    %1875 = vmatpush.msra.mxu0 0.0
    %1876 = vmatpush.msra.mxu0 0.0
    %1877 = vmatpush.msra.mxu0 0.0
    %1878 = vmatpush.msra.mxu0 0.0
    %1879 = vmatpush.msra.mxu0 0.0
    %1880 = vmatpush.msra.mxu0 0.0
    %1881 = vmatpush.msra.mxu0 0.0
    %1882 = vmatpush.msra.mxu0 0.0
    %1883 = vmatpush.msra.mxu0 0.0
    %1884 = vmatpush.msra.mxu0 %v1381
    %1885 = vmatmul.f32.gmra.mxu0 %v1827
    %v1886 = vpop.f32.mrf.mxu0
    %v1887 = vadd.f32 0.0, %v1886
    %1888 = vdwg.mxu0
    %1889 = vmatpush.msra.mxu0 0.0
    %1890 = vmatpush.msra.mxu0 0.0
    %1891 = vmatpush.msra.mxu0 0.0
    %1892 = vmatpush.msra.mxu0 0.0
    %1893 = vmatpush.msra.mxu0 0.0
    %1894 = vmatpush.msra.mxu0 0.0
    %1895 = vmatpush.msra.mxu0 0.0
    %1896 = vmatpush.msra.mxu0 0.0
    %1897 = vmatpush.msra.mxu0 0.0
    %1898 = vmatpush.msra.mxu0 0.0
    %1899 = vmatpush.msra.mxu0 0.0
    %1900 = vmatpush.msra.mxu0 0.0
    %1901 = vmatpush.msra.mxu0 0.0
    %1902 = vmatpush.msra.mxu0 0.0
    %1903 = vmatpush.msra.mxu0 0.0
    %1904 = vmatpush.msra.mxu0 %v1382
    %1905 = vmatmul.f32.gmra.mxu0 %v1827
    %v1906 = vpop.f32.mrf.mxu0
    %v1907 = vadd.f32 0.0, %v1906
    %1908 = vdwg.mxu0
    %v1909 = vadd.f32 %v1820, %v1847
    %v1910 = vadd.f32 %v1821, %v1867
    %v1911 = vadd.f32 %v1822, %v1887
    %v1912 = vadd.f32 %v1823, %v1907
    %v1913 = vld [vmem:[#allocation3 + $0x8] sm:$0xff]
    %v1914 = vld [vmem:[#allocation3 + $0x10] sm:$0xff]
    %v1915 = vld [vmem:[#allocation3 + $0x18] sm:$0xff]
    %v1916 = vld [vmem:[#allocation3 + $0x20] sm:$0xff]
    %v1917 = vld [vmem:[#allocation3 + $0x28] sm:$0xff]
    %1923 = vrot.lane.b32.xlu0 %v1913, 127
    %v1924 = vpop.permute.xlu0 %1923
    %1925 = vrot.lane.b32.xlu0 %v1914, 127
    %v1926 = vpop.permute.xlu0 %1925
    %1927 = vrot.lane.b32.xlu0 %v1915, 127
    %v1928 = vpop.permute.xlu0 %1927
    %1929 = vrot.lane.b32.xlu0 %v1916, 127
    %v1930 = vpop.permute.xlu0 %1929
    %1931 = vrot.lane.b32.xlu0 %v1917, 127
    %v1932 = vpop.permute.xlu0 %1931
    %v1933 = vsel %vm792, %v1924, %v1926
    %v1934 = vsel %vm792, %v1926, %v1928
    %v1935 = vsel %vm792, %v1928, %v1930
    %v1936 = vsel %vm792, %v1930, %v1932
    %v1941 = vsel %vm765, %v1933, 0.0
    %v1942 = vsel %vm766, %v1934, 0.0
    %v1943 = vsel %vm767, %v1935, 0.0
    %v1944 = vsel %vm768, %v1936, 0.0
    %s1945 = scalar_lea.vmem %s3, 40
    %v1946 = vld [vmem:[%s1945] sm:$0xff]
    %v1948 = vsel %vm1435, %v1946, 0
    %1950 = vmatpush.msra.mxu0 0.0
    %1951 = vmatpush.msra.mxu0 0.0
    %1952 = vmatpush.msra.mxu0 0.0
    %1953 = vmatpush.msra.mxu0 0.0
    %1954 = vmatpush.msra.mxu0 0.0
    %1955 = vmatpush.msra.mxu0 0.0
    %1956 = vmatpush.msra.mxu0 0.0
    %1957 = vmatpush.msra.mxu0 0.0
    %1958 = vmatpush.msra.mxu0 0.0
    %1959 = vmatpush.msra.mxu0 0.0
    %1960 = vmatpush.msra.mxu0 0.0
    %1961 = vmatpush.msra.mxu0 0.0
    %1962 = vmatpush.msra.mxu0 0.0
    %1963 = vmatpush.msra.mxu0 0.0
    %1964 = vmatpush.msra.mxu0 0.0
    %1965 = vmatpush.msra.mxu0 %v1941
    %1966 = vmatmul.f32.gmra.mxu0 %v1948
    %v1967 = vpop.f32.mrf.mxu0
    %v1968 = vadd.f32 0.0, %v1967
    %1969 = vdwg.mxu0
    %1970 = vmatpush.msra.mxu0 0.0
    %1971 = vmatpush.msra.mxu0 0.0
    %1972 = vmatpush.msra.mxu0 0.0
    %1973 = vmatpush.msra.mxu0 0.0
    %1974 = vmatpush.msra.mxu0 0.0
    %1975 = vmatpush.msra.mxu0 0.0
    %1976 = vmatpush.msra.mxu0 0.0
    %1977 = vmatpush.msra.mxu0 0.0
    %1978 = vmatpush.msra.mxu0 0.0
    %1979 = vmatpush.msra.mxu0 0.0
    %1980 = vmatpush.msra.mxu0 0.0
    %1981 = vmatpush.msra.mxu0 0.0
    %1982 = vmatpush.msra.mxu0 0.0
    %1983 = vmatpush.msra.mxu0 0.0
    %1984 = vmatpush.msra.mxu0 0.0
    %1985 = vmatpush.msra.mxu0 %v1942
    %1986 = vmatmul.f32.gmra.mxu0 %v1948
    %v1987 = vpop.f32.mrf.mxu0
    %v1988 = vadd.f32 0.0, %v1987
    %1989 = vdwg.mxu0
    %1990 = vmatpush.msra.mxu0 0.0
    %1991 = vmatpush.msra.mxu0 0.0
    %1992 = vmatpush.msra.mxu0 0.0
    %1993 = vmatpush.msra.mxu0 0.0
    %1994 = vmatpush.msra.mxu0 0.0
    %1995 = vmatpush.msra.mxu0 0.0
    %1996 = vmatpush.msra.mxu0 0.0
    %1997 = vmatpush.msra.mxu0 0.0
    %1998 = vmatpush.msra.mxu0 0.0
    %1999 = vmatpush.msra.mxu0 0.0
    %2000 = vmatpush.msra.mxu0 0.0
    %2001 = vmatpush.msra.mxu0 0.0
    %2002 = vmatpush.msra.mxu0 0.0
    %2003 = vmatpush.msra.mxu0 0.0
    %2004 = vmatpush.msra.mxu0 0.0
    %2005 = vmatpush.msra.mxu0 %v1943
    %2006 = vmatmul.f32.gmra.mxu0 %v1948
    %v2007 = vpop.f32.mrf.mxu0
    %v2008 = vadd.f32 0.0, %v2007
    %2009 = vdwg.mxu0
    %2010 = vmatpush.msra.mxu0 0.0
    %2011 = vmatpush.msra.mxu0 0.0
    %2012 = vmatpush.msra.mxu0 0.0
    %2013 = vmatpush.msra.mxu0 0.0
    %2014 = vmatpush.msra.mxu0 0.0
    %2015 = vmatpush.msra.mxu0 0.0
    %2016 = vmatpush.msra.mxu0 0.0
    %2017 = vmatpush.msra.mxu0 0.0
    %2018 = vmatpush.msra.mxu0 0.0
    %2019 = vmatpush.msra.mxu0 0.0
    %2020 = vmatpush.msra.mxu0 0.0
    %2021 = vmatpush.msra.mxu0 0.0
    %2022 = vmatpush.msra.mxu0 0.0
    %2023 = vmatpush.msra.mxu0 0.0
    %2024 = vmatpush.msra.mxu0 0.0
    %2025 = vmatpush.msra.mxu0 %v1944
    %2026 = vmatmul.f32.gmra.mxu0 %v1948
    %v2027 = vpop.f32.mrf.mxu0
    %v2028 = vadd.f32 0.0, %v2027
    %2029 = vdwg.mxu0
    %v2030 = vadd.f32 %v1909, %v1968
    %v2031 = vadd.f32 %v1910, %v1988
    %v2032 = vadd.f32 %v1911, %v2008
    %v2033 = vadd.f32 %v1912, %v2028
    %2034 = vrot.lane.b32.xlu0 %v1913, 113
    %v2035 = vpop.permute.xlu0 %2034
    %2036 = vrot.lane.b32.xlu0 %v1914, 113
    %v2037 = vpop.permute.xlu0 %2036
    %2038 = vrot.lane.b32.xlu0 %v1915, 113
    %v2039 = vpop.permute.xlu0 %2038
    %2040 = vrot.lane.b32.xlu0 %v1916, 113
    %v2041 = vpop.permute.xlu0 %2040
    %2042 = vrot.lane.b32.xlu0 %v1917, 113
    %v2043 = vpop.permute.xlu0 %2042
    %v2044 = vsel %vm944, %v2035, %v2037
    %v2045 = vsel %vm944, %v2037, %v2039
    %v2046 = vsel %vm944, %v2039, %v2041
    %v2047 = vsel %vm944, %v2041, %v2043
    %v2052 = vsel %vm917, %v2044, 0.0
    %v2053 = vsel %vm918, %v2045, 0.0
    %v2054 = vsel %vm919, %v2046, 0.0
    %v2055 = vsel %vm920, %v2047, 0.0
    %s2056 = scalar_lea.vmem %s3, 48
    %v2057 = vld [vmem:[%s2056] sm:$0xff]
    %v2059 = vsel %vm1435, %v2057, 0
    %2061 = vmatpush.msra.mxu0 0.0
    %2062 = vmatpush.msra.mxu0 0.0
    %2063 = vmatpush.msra.mxu0 0.0
    %2064 = vmatpush.msra.mxu0 0.0
    %2065 = vmatpush.msra.mxu0 0.0
    %2066 = vmatpush.msra.mxu0 0.0
    %2067 = vmatpush.msra.mxu0 0.0
    %2068 = vmatpush.msra.mxu0 0.0
    %2069 = vmatpush.msra.mxu0 0.0
    %2070 = vmatpush.msra.mxu0 0.0
    %2071 = vmatpush.msra.mxu0 0.0
    %2072 = vmatpush.msra.mxu0 0.0
    %2073 = vmatpush.msra.mxu0 0.0
    %2074 = vmatpush.msra.mxu0 0.0
    %2075 = vmatpush.msra.mxu0 0.0
    %2076 = vmatpush.msra.mxu0 %v2052
    %2077 = vmatmul.f32.gmra.mxu0 %v2059
    %v2078 = vpop.f32.mrf.mxu0
    %v2079 = vadd.f32 0.0, %v2078
    %2080 = vdwg.mxu0
    %2081 = vmatpush.msra.mxu0 0.0
    %2082 = vmatpush.msra.mxu0 0.0
    %2083 = vmatpush.msra.mxu0 0.0
    %2084 = vmatpush.msra.mxu0 0.0
    %2085 = vmatpush.msra.mxu0 0.0
    %2086 = vmatpush.msra.mxu0 0.0
    %2087 = vmatpush.msra.mxu0 0.0
    %2088 = vmatpush.msra.mxu0 0.0
    %2089 = vmatpush.msra.mxu0 0.0
    %2090 = vmatpush.msra.mxu0 0.0
    %2091 = vmatpush.msra.mxu0 0.0
    %2092 = vmatpush.msra.mxu0 0.0
    %2093 = vmatpush.msra.mxu0 0.0
    %2094 = vmatpush.msra.mxu0 0.0
    %2095 = vmatpush.msra.mxu0 0.0
    %2096 = vmatpush.msra.mxu0 %v2053
    %2097 = vmatmul.f32.gmra.mxu0 %v2059
    %v2098 = vpop.f32.mrf.mxu0
    %v2099 = vadd.f32 0.0, %v2098
    %2100 = vdwg.mxu0
    %2101 = vmatpush.msra.mxu0 0.0
    %2102 = vmatpush.msra.mxu0 0.0
    %2103 = vmatpush.msra.mxu0 0.0
    %2104 = vmatpush.msra.mxu0 0.0
    %2105 = vmatpush.msra.mxu0 0.0
    %2106 = vmatpush.msra.mxu0 0.0
    %2107 = vmatpush.msra.mxu0 0.0
    %2108 = vmatpush.msra.mxu0 0.0
    %2109 = vmatpush.msra.mxu0 0.0
    %2110 = vmatpush.msra.mxu0 0.0
    %2111 = vmatpush.msra.mxu0 0.0
    %2112 = vmatpush.msra.mxu0 0.0
    %2113 = vmatpush.msra.mxu0 0.0
    %2114 = vmatpush.msra.mxu0 0.0
    %2115 = vmatpush.msra.mxu0 0.0
    %2116 = vmatpush.msra.mxu0 %v2054
    %2117 = vmatmul.f32.gmra.mxu0 %v2059
    %v2118 = vpop.f32.mrf.mxu0
    %v2119 = vadd.f32 0.0, %v2118
    %2120 = vdwg.mxu0
    %2121 = vmatpush.msra.mxu0 0.0
    %2122 = vmatpush.msra.mxu0 0.0
    %2123 = vmatpush.msra.mxu0 0.0
    %2124 = vmatpush.msra.mxu0 0.0
    %2125 = vmatpush.msra.mxu0 0.0
    %2126 = vmatpush.msra.mxu0 0.0
    %2127 = vmatpush.msra.mxu0 0.0
    %2128 = vmatpush.msra.mxu0 0.0
    %2129 = vmatpush.msra.mxu0 0.0
    %2130 = vmatpush.msra.mxu0 0.0
    %2131 = vmatpush.msra.mxu0 0.0
    %2132 = vmatpush.msra.mxu0 0.0
    %2133 = vmatpush.msra.mxu0 0.0
    %2134 = vmatpush.msra.mxu0 0.0
    %2135 = vmatpush.msra.mxu0 0.0
    %2136 = vmatpush.msra.mxu0 %v2055
    %2137 = vmatmul.f32.gmra.mxu0 %v2059
    %v2138 = vpop.f32.mrf.mxu0
    %v2139 = vadd.f32 0.0, %v2138
    %2140 = vdwg.mxu0
    %v2141 = vadd.f32 %v2030, %v2079
    %v2142 = vadd.f32 %v2031, %v2099
    %v2143 = vadd.f32 %v2032, %v2119
    %v2144 = vadd.f32 %v2033, %v2139
    %2145 = vrot.lane.b32.xlu0 %v1913, 112
    %v2146 = vpop.permute.xlu0 %2145
    %2147 = vrot.lane.b32.xlu0 %v1914, 112
    %v2148 = vpop.permute.xlu0 %2147
    %2149 = vrot.lane.b32.xlu0 %v1915, 112
    %v2150 = vpop.permute.xlu0 %2149
    %2151 = vrot.lane.b32.xlu0 %v1916, 112
    %v2152 = vpop.permute.xlu0 %2151
    %2153 = vrot.lane.b32.xlu0 %v1917, 112
    %v2154 = vpop.permute.xlu0 %2153
    %v2155 = vsel %vm1092, %v2146, %v2148
    %v2156 = vsel %vm1092, %v2148, %v2150
    %v2157 = vsel %vm1092, %v2150, %v2152
    %v2158 = vsel %vm1092, %v2152, %v2154
    %v2163 = vsel %vm1065, %v2155, 0.0
    %v2164 = vsel %vm1066, %v2156, 0.0
    %v2165 = vsel %vm1067, %v2157, 0.0
    %v2166 = vsel %vm1068, %v2158, 0.0
    %s2167 = scalar_lea.vmem %s3, 56
    %v2168 = vld [vmem:[%s2167] sm:$0xff]
    %v2170 = vsel %vm1435, %v2168, 0
    %2172 = vmatpush.msra.mxu0 0.0
    %2173 = vmatpush.msra.mxu0 0.0
    %2174 = vmatpush.msra.mxu0 0.0
    %2175 = vmatpush.msra.mxu0 0.0
    %2176 = vmatpush.msra.mxu0 0.0
    %2177 = vmatpush.msra.mxu0 0.0
    %2178 = vmatpush.msra.mxu0 0.0
    %2179 = vmatpush.msra.mxu0 0.0
    %2180 = vmatpush.msra.mxu0 0.0
    %2181 = vmatpush.msra.mxu0 0.0
    %2182 = vmatpush.msra.mxu0 0.0
    %2183 = vmatpush.msra.mxu0 0.0
    %2184 = vmatpush.msra.mxu0 0.0
    %2185 = vmatpush.msra.mxu0 0.0
    %2186 = vmatpush.msra.mxu0 0.0
    %2187 = vmatpush.msra.mxu0 %v2163
    %2188 = vmatmul.f32.gmra.mxu0 %v2170
    %v2189 = vpop.f32.mrf.mxu0
    %v2190 = vadd.f32 0.0, %v2189
    %2191 = vdwg.mxu0
    %2192 = vmatpush.msra.mxu0 0.0
    %2193 = vmatpush.msra.mxu0 0.0
    %2194 = vmatpush.msra.mxu0 0.0
    %2195 = vmatpush.msra.mxu0 0.0
    %2196 = vmatpush.msra.mxu0 0.0
    %2197 = vmatpush.msra.mxu0 0.0
    %2198 = vmatpush.msra.mxu0 0.0
    %2199 = vmatpush.msra.mxu0 0.0
    %2200 = vmatpush.msra.mxu0 0.0
    %2201 = vmatpush.msra.mxu0 0.0
    %2202 = vmatpush.msra.mxu0 0.0
    %2203 = vmatpush.msra.mxu0 0.0
    %2204 = vmatpush.msra.mxu0 0.0
    %2205 = vmatpush.msra.mxu0 0.0
    %2206 = vmatpush.msra.mxu0 0.0
    %2207 = vmatpush.msra.mxu0 %v2164
    %2208 = vmatmul.f32.gmra.mxu0 %v2170
    %v2209 = vpop.f32.mrf.mxu0
    %v2210 = vadd.f32 0.0, %v2209
    %2211 = vdwg.mxu0
    %2212 = vmatpush.msra.mxu0 0.0
    %2213 = vmatpush.msra.mxu0 0.0
    %2214 = vmatpush.msra.mxu0 0.0
    %2215 = vmatpush.msra.mxu0 0.0
    %2216 = vmatpush.msra.mxu0 0.0
    %2217 = vmatpush.msra.mxu0 0.0
    %2218 = vmatpush.msra.mxu0 0.0
    %2219 = vmatpush.msra.mxu0 0.0
    %2220 = vmatpush.msra.mxu0 0.0
    %2221 = vmatpush.msra.mxu0 0.0
    %2222 = vmatpush.msra.mxu0 0.0
    %2223 = vmatpush.msra.mxu0 0.0
    %2224 = vmatpush.msra.mxu0 0.0
    %2225 = vmatpush.msra.mxu0 0.0
    %2226 = vmatpush.msra.mxu0 0.0
    %2227 = vmatpush.msra.mxu0 %v2165
    %2228 = vmatmul.f32.gmra.mxu0 %v2170
    %v2229 = vpop.f32.mrf.mxu0
    %v2230 = vadd.f32 0.0, %v2229
    %2231 = vdwg.mxu0
    %2232 = vmatpush.msra.mxu0 0.0
    %2233 = vmatpush.msra.mxu0 0.0
    %2234 = vmatpush.msra.mxu0 0.0
    %2235 = vmatpush.msra.mxu0 0.0
    %2236 = vmatpush.msra.mxu0 0.0
    %2237 = vmatpush.msra.mxu0 0.0
    %2238 = vmatpush.msra.mxu0 0.0
    %2239 = vmatpush.msra.mxu0 0.0
    %2240 = vmatpush.msra.mxu0 0.0
    %2241 = vmatpush.msra.mxu0 0.0
    %2242 = vmatpush.msra.mxu0 0.0
    %2243 = vmatpush.msra.mxu0 0.0
    %2244 = vmatpush.msra.mxu0 0.0
    %2245 = vmatpush.msra.mxu0 0.0
    %2246 = vmatpush.msra.mxu0 0.0
    %2247 = vmatpush.msra.mxu0 %v2166
    %2248 = vmatmul.f32.gmra.mxu0 %v2170
    %v2249 = vpop.f32.mrf.mxu0
    %v2250 = vadd.f32 0.0, %v2249
    %2251 = vdwg.mxu0
    %v2252 = vadd.f32 %v2141, %v2190
    %v2253 = vadd.f32 %v2142, %v2210
    %v2254 = vadd.f32 %v2143, %v2230
    %v2255 = vadd.f32 %v2144, %v2250
    %2256 = vrot.lane.b32.xlu0 %v1913, 111
    %v2257 = vpop.permute.xlu0 %2256
    %2258 = vrot.lane.b32.xlu0 %v1914, 111
    %v2259 = vpop.permute.xlu0 %2258
    %2260 = vrot.lane.b32.xlu0 %v1915, 111
    %v2261 = vpop.permute.xlu0 %2260
    %2262 = vrot.lane.b32.xlu0 %v1916, 111
    %v2263 = vpop.permute.xlu0 %2262
    %2264 = vrot.lane.b32.xlu0 %v1917, 111
    %v2265 = vpop.permute.xlu0 %2264
    %v2266 = vsel %vm1244, %v2257, %v2259
    %v2267 = vsel %vm1244, %v2259, %v2261
    %v2268 = vsel %vm1244, %v2261, %v2263
    %v2269 = vsel %vm1244, %v2263, %v2265
    %v2274 = vsel %vm1217, %v2266, 0.0
    %v2275 = vsel %vm1218, %v2267, 0.0
    %v2276 = vsel %vm1219, %v2268, 0.0
    %v2277 = vsel %vm1220, %v2269, 0.0
    %s2278 = scalar_lea.vmem %s3, 64
    %v2279 = vld [vmem:[%s2278] sm:$0xff]
    %v2281 = vsel %vm1435, %v2279, 0
    %2283 = vmatpush.msra.mxu0 0.0
    %2284 = vmatpush.msra.mxu0 0.0
    %2285 = vmatpush.msra.mxu0 0.0
    %2286 = vmatpush.msra.mxu0 0.0
    %2287 = vmatpush.msra.mxu0 0.0
    %2288 = vmatpush.msra.mxu0 0.0
    %2289 = vmatpush.msra.mxu0 0.0
    %2290 = vmatpush.msra.mxu0 0.0
    %2291 = vmatpush.msra.mxu0 0.0
    %2292 = vmatpush.msra.mxu0 0.0
    %2293 = vmatpush.msra.mxu0 0.0
    %2294 = vmatpush.msra.mxu0 0.0
    %2295 = vmatpush.msra.mxu0 0.0
    %2296 = vmatpush.msra.mxu0 0.0
    %2297 = vmatpush.msra.mxu0 0.0
    %2298 = vmatpush.msra.mxu0 %v2274
    %2299 = vmatmul.f32.gmra.mxu0 %v2281
    %v2300 = vpop.f32.mrf.mxu0
    %v2301 = vadd.f32 0.0, %v2300
    %2302 = vdwg.mxu0
    %2303 = vmatpush.msra.mxu0 0.0
    %2304 = vmatpush.msra.mxu0 0.0
    %2305 = vmatpush.msra.mxu0 0.0
    %2306 = vmatpush.msra.mxu0 0.0
    %2307 = vmatpush.msra.mxu0 0.0
    %2308 = vmatpush.msra.mxu0 0.0
    %2309 = vmatpush.msra.mxu0 0.0
    %2310 = vmatpush.msra.mxu0 0.0
    %2311 = vmatpush.msra.mxu0 0.0
    %2312 = vmatpush.msra.mxu0 0.0
    %2313 = vmatpush.msra.mxu0 0.0
    %2314 = vmatpush.msra.mxu0 0.0
    %2315 = vmatpush.msra.mxu0 0.0
    %2316 = vmatpush.msra.mxu0 0.0
    %2317 = vmatpush.msra.mxu0 0.0
    %2318 = vmatpush.msra.mxu0 %v2275
    %2319 = vmatmul.f32.gmra.mxu0 %v2281
    %v2320 = vpop.f32.mrf.mxu0
    %v2321 = vadd.f32 0.0, %v2320
    %2322 = vdwg.mxu0
    %2323 = vmatpush.msra.mxu0 0.0
    %2324 = vmatpush.msra.mxu0 0.0
    %2325 = vmatpush.msra.mxu0 0.0
    %2326 = vmatpush.msra.mxu0 0.0
    %2327 = vmatpush.msra.mxu0 0.0
    %2328 = vmatpush.msra.mxu0 0.0
    %2329 = vmatpush.msra.mxu0 0.0
    %2330 = vmatpush.msra.mxu0 0.0
    %2331 = vmatpush.msra.mxu0 0.0
    %2332 = vmatpush.msra.mxu0 0.0
    %2333 = vmatpush.msra.mxu0 0.0
    %2334 = vmatpush.msra.mxu0 0.0
    %2335 = vmatpush.msra.mxu0 0.0
    %2336 = vmatpush.msra.mxu0 0.0
    %2337 = vmatpush.msra.mxu0 0.0
    %2338 = vmatpush.msra.mxu0 %v2276
    %2339 = vmatmul.f32.gmra.mxu0 %v2281
    %v2340 = vpop.f32.mrf.mxu0
    %v2341 = vadd.f32 0.0, %v2340
    %2342 = vdwg.mxu0
    %2343 = vmatpush.msra.mxu0 0.0
    %2344 = vmatpush.msra.mxu0 0.0
    %2345 = vmatpush.msra.mxu0 0.0
    %2346 = vmatpush.msra.mxu0 0.0
    %2347 = vmatpush.msra.mxu0 0.0
    %2348 = vmatpush.msra.mxu0 0.0
    %2349 = vmatpush.msra.mxu0 0.0
    %2350 = vmatpush.msra.mxu0 0.0
    %2351 = vmatpush.msra.mxu0 0.0
    %2352 = vmatpush.msra.mxu0 0.0
    %2353 = vmatpush.msra.mxu0 0.0
    %2354 = vmatpush.msra.mxu0 0.0
    %2355 = vmatpush.msra.mxu0 0.0
    %2356 = vmatpush.msra.mxu0 0.0
    %2357 = vmatpush.msra.mxu0 0.0
    %2358 = vmatpush.msra.mxu0 %v2277
    %2359 = vmatmul.f32.gmra.mxu0 %v2281
    %v2360 = vpop.f32.mrf.mxu0
    %v2361 = vadd.f32 0.0, %v2360
    %2362 = vdwg.mxu0
    %v2363 = vadd.f32 %v2252, %v2301
    %v2364 = vadd.f32 %v2253, %v2321
    %v2365 = vadd.f32 %v2254, %v2341
    %v2366 = vadd.f32 %v2255, %v2361
    %v2367 = vld [vmem:[%s4] sm:$0xff]
    %2369 = vset.pattern.permute.xlu0 0
    %2370 = vperm.xlu0 %2369, %v2367
    %v2371 = vpop.permute.xlu0 %2370
    %v2373 = vadd.f32 %v2363, %v2371
    %v2374 = vadd.f32 %v2364, %v2371
    %v2375 = vadd.f32 %v2365, %v2371
    %v2376 = vadd.f32 %v2366, %v2371
    %v2377 = vmax.f32 %v2373, 0.0
    %v2378 = vmax.f32 %v2374, 0.0
    %v2379 = vmax.f32 %v2375, 0.0
    %v2380 = vmax.f32 %v2376, 0.0
    %2381 = vst [vmem:[#allocation4] sm:$0xff] %v2377
    %2382 = vst [vmem:[#allocation4 + $0x8] sm:$0xff] %v2378
    %s2383 = scalar_lea.vmem [#allocation4], 16
    %2384 = vst [vmem:[%s2383] sm:$0xff] %v2379
    %2385 = vst [vmem:[%s2383 + $0x8] sm:$0xff] %v2380
    // Predicated region
    $region22: #{tpu_custom_call.1} parent=1 // pred_check
      _
    $region23: #{tpu_custom_call.1} parent=1 // pred_check_branch
      %2387 = sbr.rel (0) target = $region25
    $region24: #{tpu_custom_call.1} parent=1 // pred_region
      %2389 = vsyncadd [#allocation5], 0
      %s2390 = sshll.u32 [#allocation4], 4
      %s2391 = int_to_ptr.vmem [resolvable:$true] %s2390
      %s2392 = sshll.u32 %s5, 4
      %s2393 = int_to_ptr.hbm [resolvable:$true] %s2392
      %2398 = dma.vmem_to_hbm [thread:$0]  %s2391, 512, %s2393, [#allocation5], 256, 256, 16
    $region25: #{tpu_custom_call.1} parent=1 // pred_fallthru
      _
    // Predicated region
    $region26: #{tpu_custom_call.1} parent=1 // pred_check
      _
    $region27: #{tpu_custom_call.1} parent=1 // pred_check_branch
      %2400 = sbr.rel (0) target = $region29
    $region28: #{tpu_custom_call.1} parent=1 // pred_region
      %2402 = dma.done [#allocation5], 512
    $region29: #{tpu_custom_call.1} parent=1 // pred_fallthru
      _
    %2403 = vsyncpa [#allocation5], 1

</llo_original>
